<compile_context>
chip_gen: v7x
topology: tpu7x:2x2x1
jax: 0.10.0
libtpu: 0.0.40
codegen_flags: <defaults>
</compile_context>

<pallas_src>
import functools
import math

import jax
import jax.numpy as jnp
from jax import lax
from jax.experimental import pallas as pl
from jax.experimental.pallas import tpu as pltpu

EPS = 1e-5
MXU_DTYPE = jnp.bfloat16   # matmul operand dtype; accumulation is always f32


def _layernorm(x, gamma, beta):
    # Two-pass (centered) variance: robust against cancellation for large-mean x.
    mu = jnp.mean(x, axis=-1, keepdims=True)
    xc = x - mu
    var = jnp.mean(xc * xc, axis=-1, keepdims=True)
    return xc * lax.rsqrt(var + EPS) * gamma + beta


def _mha_ffn_kernel(
    xq_ref, xkv_ref,
    wq_ref, bq_ref, wkv_ref, bkv_ref, wo_ref, bo_ref,
    ln_ref, w1_ref, b1_ref, w2_ref, b2_ref,
    out_ref,
    *, tb, nq, nk, h, d_k, d_v, d_ff, ff_chunk, exp_dtype,
):
    rows_q = tb * nq
    d_model = wo_ref.shape[1]

    x_q = xq_ref[...]                          # (tb*nq, d_model) f32
    x_kv = xkv_ref[...]                        # (tb*nk, d_model) f32

    # ---- projections: one matmul for Q (1/sqrt(d_k) pre-folded), one fused K|V ----
    q = jnp.dot(x_q.astype(MXU_DTYPE), wq_ref[...],
                preferred_element_type=jnp.float32) + bq_ref[...]
    kv = jnp.dot(x_kv.astype(MXU_DTYPE), wkv_ref[...],
                 preferred_element_type=jnp.float32) + bkv_ref[...]

    # Leading-dim-only reshapes (layout-preserving when nq/nk are sublane-aligned);
    # a single bf16 cast for the fused K|V, split at the 128-aligned h*d_k offset.
    q3 = q.reshape(tb, nq, h * d_k).astype(MXU_DTYPE)
    kv3 = kv.reshape(tb, nk, h * (d_k + d_v)).astype(MXU_DTYPE)
    k3 = kv3[:, :, : h * d_k]
    v3 = kv3[:, :, h * d_k:]

    # ---- attention, batched over tb per head; output projection accumulated
    #      per head (no h-way concat, no (rows, h*d_v) materialization) ----
    att_out = jnp.zeros((rows_q, d_model), jnp.float32)
    for head in range(h):
        qh = q3[:, :, head * d_k:(head + 1) * d_k]          # (tb, nq, d_k)
        kh = k3[:, :, head * d_k:(head + 1) * d_k]          # (tb, nk, d_k)
        vh = v3[:, :, head * d_v:(head + 1) * d_v]          # (tb, nk, d_v)
        s = jnp.einsum('bqd,bkd->bqk', qh, kh,
                       preferred_element_type=jnp.float32)  # (tb, nq, nk) f32
        s = s - jnp.max(s, axis=-1, keepdims=True)
        p = jnp.exp(s.astype(exp_dtype))                    # bf16 EUP on v6e/v7x
        inv = pl.reciprocal(
            jnp.sum(p.astype(jnp.float32), axis=-1, keepdims=True), approx=True)
        o_h = jnp.einsum('bqk,bkd->bqd', p.astype(MXU_DTYPE), vh,
                         preferred_element_type=jnp.float32) * inv   # (tb, nq, d_v)
        # Wo row slice is static and sublane-aligned (d_v multiple of 16 for bf16).
        att_out = att_out + jnp.dot(
            o_h.reshape(rows_q, d_v).astype(MXU_DTYPE),
            wo_ref[head * d_v:(head + 1) * d_v, :],
            preferred_element_type=jnp.float32)
    att_out = att_out + bo_ref[...]

    # ---- residual + LayerNorm ----
    ln = ln_ref[...]                                         # (4, d_model) f32
    x1 = _layernorm(x_q + att_out, ln[0:1, :], ln[1:2, :])

    # ---- position-wise feed forward, tiled over d_ff (128-aligned chunks) ----
    x1b = x1.astype(MXU_DTYPE)
    f2 = jnp.zeros_like(x1)
    for c0 in range(0, d_ff, ff_chunk):
        c1 = c0 + ff_chunk
        f1c = jnp.maximum(
            jnp.dot(x1b, w1_ref[:, c0:c1], preferred_element_type=jnp.float32)
            + b1_ref[:, c0:c1], 0.0)
        f2 = f2 + jnp.dot(f1c.astype(MXU_DTYPE), w2_ref[c0:c1, :],
                          preferred_element_type=jnp.float32)
    f2 = f2 + b2_ref[...]
    y = _layernorm(x1 + f2, ln[2:3, :], ln[3:4, :])

    out_ref[...] = y.astype(out_ref.dtype)                   # lane-dense (rows, d_model) store


# ---------------- wrapper helpers ----------------
def pack_params(p, d_k):
    """Fold 1/sqrt(d_k) into Q projection, fuse the K|V projections (keys == values
    here), stack LN params, cast matmul weights to bf16 (biases / LN stay f32)."""
    scale = 1.0 / math.sqrt(d_k)
    return dict(
        wq=(p["wq"] * scale).astype(MXU_DTYPE),
        bq=(p["bq"] * scale).astype(jnp.float32),
        wkv=jnp.concatenate([p["wk"], p["wv"]], axis=1).astype(MXU_DTYPE),
        bkv=jnp.concatenate([p["bk"], p["bv"]], axis=1).astype(jnp.float32),
        wo=p["wo"].astype(MXU_DTYPE),
        bo=p["bo"].astype(jnp.float32),
        ln=jnp.concatenate([p["ln1_g"], p["ln1_b"], p["ln2_g"], p["ln2_b"]],
                           axis=0).astype(jnp.float32),
        w1=p["w1"].astype(MXU_DTYPE),
        b1=p["b1"].astype(jnp.float32),
        w2=p["w2"].astype(MXU_DTYPE),
        b2=p["b2"].astype(jnp.float32),
    )


def _device_kind():
    try:
        return jax.devices()[0].device_kind.lower()
    except Exception:
        return ""


def _is_v7(kind):
    return ("v7" in kind) or ("7x" in kind)


def _softmax_exp_dtype(kind=None):
    kind = _device_kind() if kind is None else kind
    # bf16 EUP exists on v6e/v7x; keep f32 exp on v5e and older.
    return jnp.bfloat16 if ("v6" in kind or _is_v7(kind)) else jnp.float32


def _vmem_limit_bytes():
    try:
        cap = int(pltpu.get_tpu_info().vmem_capacity_bytes)
    except Exception:
        cap = 64 * 1024 * 1024
    # leave ~16 MiB headroom for pipeline buffers / Mosaic internal scratch
    return max(32 * 1024 * 1024, min(cap - 16 * 1024 * 1024, 112 * 1024 * 1024))


def _pick_tb(B, nq, nk, d_model, *, target_rows, min_grid_steps):
    """Largest divisor of B giving <= target_rows sequence rows per block, keeping
    the (8,128) block constraint legal and (if requested) >= min_grid_steps steps."""
    rows_per_batch = max(nq, nk)
    max_tb = max(B // min_grid_steps, 1) if B >= min_grid_steps else B
    best = None
    for cand in range(1, B + 1):
        if B % cand:
            continue
        legal = (cand == B) or (
            (cand * nq) % 8 == 0 and (cand * nk) % 8 == 0 and d_model % 128 == 0)
        if not legal:
            continue
        if cand <= max_tb and cand * rows_per_batch <= max(target_rows, rows_per_batch):
            best = cand
    return best if best is not None else B   # full-array block is always legal


def _pick_ff_chunk(d_ff, max_chunk=512):
    if d_ff <= max_chunk:
        return d_ff
    best = None
    for c in range(128, max_chunk + 1, 128):
        if d_ff % c == 0:
            best = c
    return best if best is not None else d_ff


def _weight_spec(shape):
    # Constant block index -> never re-DMA'd; single-buffer to halve weight VMEM.
    try:
        return pl.BlockSpec(shape, lambda i: (0, 0), pipeline_mode=pl.Buffered(1))
    except TypeError:   # older BlockSpec signature without pipeline_mode
        return pl.BlockSpec(shape, lambda i: (0, 0))


def inter_module_attn_layer(input_1, input_2, params, *, h, d_k, d_v):
    """InterModuleAttnLayer.forward: queries = input_1, keys = values = input_2."""
    B, nq, d_model = input_1.shape
    nk = input_2.shape[1]
    d_ff = params["w1"].shape[1]
    kp = pack_params(params, d_k)

    kind = _device_kind()
    is_v7 = _is_v7(kind)
    tb = _pick_tb(B, nq, nk, d_model,
                  target_rows=512 if is_v7 else 1024,
                  min_grid_steps=2 if is_v7 else 1)
    ff_chunk = _pick_ff_chunk(d_ff)
    exp_dtype = _softmax_exp_dtype(kind)

    xq = input_1.reshape(B * nq, d_model)
    xkv = input_2.reshape(B * nk, d_model)

    weight_order = ("wq", "bq", "wkv", "bkv", "wo", "bo", "ln", "w1", "b1", "w2", "b2")
    weights = [kp[name] for name in weight_order]

    kernel = functools.partial(
        _mha_ffn_kernel, tb=tb, nq=nq, nk=nk, h=h, d_k=d_k, d_v=d_v,
        d_ff=d_ff, ff_chunk=ff_chunk, exp_dtype=exp_dtype)

    # advisory cost estimate so XLA schedules surrounding ops sensibly
    flops = 2 * (B * nq * d_model * h * d_k
                 + B * nk * d_model * h * (d_k + d_v)
                 + B * h * nq * nk * (d_k + d_v)
                 + B * nq * h * d_v * d_model
                 + 2 * B * nq * d_model * d_ff)
    transcendentals = B * h * nq * nk + 4 * B * nq
    bytes_accessed = (4 * (xq.size + xkv.size + B * nq * d_model)
                      + sum(int(w.size) * w.dtype.itemsize for w in weights))
    cost = pl.CostEstimate(flops=int(flops), transcendentals=int(transcendentals),
                           bytes_accessed=int(bytes_accessed))

    out2d = pl.pallas_call(
        kernel,
        out_shape=jax.ShapeDtypeStruct((B * nq, d_model), input_1.dtype),
        grid_spec=pltpu.PrefetchScalarGridSpec(
            num_scalar_prefetch=0,
            grid=(B // tb,),
            in_specs=[
                pl.BlockSpec((tb * nq, d_model), lambda i: (i, 0)),
                pl.BlockSpec((tb * nk, d_model), lambda i: (i, 0)),
            ] + [_weight_spec(w.shape) for w in weights],
            out_specs=pl.BlockSpec((tb * nq, d_model), lambda i: (i, 0)),
        ),
        compiler_params=pltpu.CompilerParams(
            dimension_semantics=("parallel",),
            vmem_limit_bytes=_vmem_limit_bytes(),
        ),
        cost_estimate=cost,
    )(xq, xkv, *weights)

    return out2d.reshape(B, nq, d_model)


# ---------------- parameter construction (deterministic, in-script) ----------------
def xavier_normal(key, fan_out, fan_in, gain=1.0):
    std = gain * math.sqrt(2.0 / (fan_in + fan_out))
    # PyTorch nn.Linear weight layout is (out, in); return transposed (in, out) for x @ W.
    return (jax.random.normal(key, (fan_out, fan_in), jnp.float32) * std).T


def make_params(key, d_model, d_k, d_v, h, d_ff):
    ks = jax.random.split(key, 6)
    return {
        "wq": xavier_normal(ks[0], h * d_k, d_model),
        "bq": jnp.zeros((1, h * d_k), jnp.float32),
        "wk": xavier_normal(ks[1], h * d_k, d_model),
        "bk": jnp.zeros((1, h * d_k), jnp.float32),
        "wv": xavier_normal(ks[2], h * d_v, d_model),
        "bv": jnp.zeros((1, h * d_v), jnp.float32),
        "wo": xavier_normal(ks[3], d_model, h * d_v),
        "bo": jnp.zeros((1, d_model), jnp.float32),
        "ln1_g": jnp.ones((1, d_model), jnp.float32),
        "ln1_b": jnp.zeros((1, d_model), jnp.float32),
        "w1": jax.random.normal(ks[4], (d_model, d_ff), jnp.float32) / math.sqrt(d_model),
        "b1": jnp.zeros((1, d_ff), jnp.float32),
        "w2": jax.random.normal(ks[5], (d_ff, d_model), jnp.float32) / math.sqrt(d_ff),
        "b2": jnp.zeros((1, d_model), jnp.float32),
        "ln2_g": jnp.ones((1, d_model), jnp.float32),
        "ln2_b": jnp.zeros((1, d_model), jnp.float32),
    }


# ---------------- pure-JAX reference (mirrors the kernel's bf16-matmul / f32-else
# precision policy and the exp dtype so the check stays tight; softmax
# normalization itself is exact) ----------------
def reference(input_1, input_2, p, *, h, d_k, d_v, exp_dtype=jnp.float32):
    B, nq, _ = input_1.shape
    nk = input_2.shape[1]
    c = MXU_DTYPE
    scale = 1.0 / math.sqrt(d_k)

    def mm(a, w):
        return jnp.dot(a.astype(c), w.astype(c), preferred_element_type=jnp.float32)

    q = mm(input_1, p["wq"] * scale) + p["bq"] * scale
    k = mm(input_2, p["wk"]) + p["bk"]
    v = mm(input_2, p["wv"]) + p["bv"]
    q = q.astype(c).reshape(B, nq, h, d_k).transpose(0, 2, 1, 3)
    k = k.astype(c).reshape(B, nk, h, d_k).transpose(0, 2, 1, 3)
    v = v.astype(c).reshape(B, nk, h, d_v).transpose(0, 2, 1, 3)
    att = jnp.einsum("bhqd,bhkd->bhqk", q, k, preferred_element_type=jnp.float32)
    att = att - att.max(-1, keepdims=True)
    pe = jnp.exp(att.astype(exp_dtype)).astype(jnp.float32)
    att = pe / pe.sum(-1, keepdims=True)
    out = jnp.einsum("bhqk,bhkd->bhqd", att.astype(c), v,
                     preferred_element_type=jnp.float32)
    out = out.transpose(0, 2, 1, 3).reshape(B, nq, h * d_v)
    out = mm(out, p["wo"]) + p["bo"]
    x = _layernorm(input_1 + out, p["ln1_g"], p["ln1_b"])
    f1 = jax.nn.relu(mm(x, p["w1"]) + p["b1"])
    f2 = mm(f1, p["w2"]) + p["b2"]
    return _layernorm(x + f2, p["ln2_g"], p["ln2_b"])


if __name__ == "__main__":
    # Small shapes consistent with the module (defaults d_model=512, d_k=d_v=64, h=8,
    # d_ff=2048) scaled down, keeping d_model a multiple of 128 for lane-dense stores.
    B, N = 2, 8
    d_model, d_k, d_v, h, d_ff = 128, 32, 32, 4, 256

    key = jax.random.PRNGKey(0)
    k1, k2, kp = jax.random.split(key, 3)
    input_1 = jax.random.normal(k1, (B, N, d_model), jnp.float32)   # queries
    input_2 = jax.random.normal(k2, (B, N, d_model), jnp.float32)   # keys = values
    params = make_params(kp, d_model, d_k, d_v, h, d_ff)

    out = inter_module_attn_layer(input_1, input_2, params, h=h, d_k=d_k, d_v=d_v)
    out = jax.block_until_ready(out)

    ref = reference(input_1, input_2, params, h=h, d_k=d_k, d_v=d_v,
                    exp_dtype=_softmax_exp_dtype())
    assert out.shape == (B, N, d_model)
    # tolerance covers the approximate EUP reciprocal and post-matmul normalization
    assert jnp.allclose(out, ref, atol=2e-2, rtol=2e-2), "mismatch vs reference"

    print("KERNEL_OK")
</pallas_src>

<mosaic_0001>
module attributes {stable_mosaic.version = 11 : i64} {
  func.func @_mha_ffn_kernel(%arg0: i32, %arg1: memref<16x128xf32, #tpu.memory_space<vmem>>, %arg2: memref<16x128xf32, #tpu.memory_space<vmem>>, %arg3: memref<128x128xbf16, #tpu.memory_space<vmem>>, %arg4: memref<1x128xf32, #tpu.memory_space<vmem>>, %arg5: memref<128x256xbf16, #tpu.memory_space<vmem>>, %arg6: memref<1x256xf32, #tpu.memory_space<vmem>>, %arg7: memref<128x128xbf16, #tpu.memory_space<vmem>>, %arg8: memref<1x128xf32, #tpu.memory_space<vmem>>, %arg9: memref<4x128xf32, #tpu.memory_space<vmem>>, %arg10: memref<128x256xbf16, #tpu.memory_space<vmem>>, %arg11: memref<1x256xf32, #tpu.memory_space<vmem>>, %arg12: memref<256x128xbf16, #tpu.memory_space<vmem>>, %arg13: memref<1x128xf32, #tpu.memory_space<vmem>>, %arg14: memref<16x128xf32, #tpu.memory_space<vmem>>) attributes {dimension_semantics = [#tpu.dimension_semantics<parallel>], iteration_bounds = array<i64: 1>, scalar_prefetch = 0 : i64, scratch_operands = 0 : i64, tpu.core_type = #tpu.core_type<tc>, window_params = [{transform_indices = @transform_0, window_bounds = array<i64: 16, 128>}, {transform_indices = @transform_1, window_bounds = array<i64: 16, 128>}, {pipeline_mode = #tpu.pipeline_mode<synchronous>, transform_indices = @transform_2, window_bounds = array<i64: 128, 128>}, {pipeline_mode = #tpu.pipeline_mode<synchronous>, transform_indices = @transform_3, window_bounds = array<i64: 1, 128>}, {pipeline_mode = #tpu.pipeline_mode<synchronous>, transform_indices = @transform_4, window_bounds = array<i64: 128, 256>}, {pipeline_mode = #tpu.pipeline_mode<synchronous>, transform_indices = @transform_5, window_bounds = array<i64: 1, 256>}, {pipeline_mode = #tpu.pipeline_mode<synchronous>, transform_indices = @transform_6, window_bounds = array<i64: 128, 128>}, {pipeline_mode = #tpu.pipeline_mode<synchronous>, transform_indices = @transform_7, window_bounds = array<i64: 1, 128>}, {pipeline_mode = #tpu.pipeline_mode<synchronous>, transform_indices = @transform_8, window_bounds = array<i64: 4, 128>}, {pipeline_mode = #tpu.pipeline_mode<synchronous>, transform_indices = @transform_9, window_bounds = array<i64: 128, 256>}, {pipeline_mode = #tpu.pipeline_mode<synchronous>, transform_indices = @transform_10, window_bounds = array<i64: 1, 256>}, {pipeline_mode = #tpu.pipeline_mode<synchronous>, transform_indices = @transform_11, window_bounds = array<i64: 256, 128>}, {pipeline_mode = #tpu.pipeline_mode<synchronous>, transform_indices = @transform_12, window_bounds = array<i64: 1, 128>}, {transform_indices = @transform_13, window_bounds = array<i64: 16, 128>}]} {
    %c0 = arith.constant 0 : index
    %c0_0 = arith.constant 0 : index
    %0 = vector.load %arg1[%c0, %c0_0] : memref<16x128xf32, #tpu.memory_space<vmem>>, vector<16x128xf32>
    %c0_1 = arith.constant 0 : index
    %c0_2 = arith.constant 0 : index
    %1 = vector.load %arg2[%c0_1, %c0_2] : memref<16x128xf32, #tpu.memory_space<vmem>>, vector<16x128xf32>
    %2 = arith.truncf %0 : vector<16x128xf32> to vector<16x128xbf16>
    %c0_3 = arith.constant 0 : index
    %c0_4 = arith.constant 0 : index
    %3 = vector.load %arg3[%c0_3, %c0_4] : memref<128x128xbf16, #tpu.memory_space<vmem>>, vector<128x128xbf16>
    %cst = arith.constant dense<0.000000e+00> : vector<16x128xf32>
    %4 = tpu.matmul %2, %3, %cst {dimension_numbers = #tpu.dot_dimension_numbers<[1], [0], [0], [1], [0, 0, 1, 1], [], []>} : vector<16x128xbf16>, vector<128x128xbf16>, vector<16x128xf32> -> vector<16x128xf32>
    %c0_5 = arith.constant 0 : index
    %c0_6 = arith.constant 0 : index
    %5 = vector.load %arg4[%c0_5, %c0_6] : memref<1x128xf32, #tpu.memory_space<vmem>>, vector<1x128xf32>
    %6 = vector.broadcast %5 : vector<1x128xf32> to vector<16x128xf32>
    %7 = arith.addf %4, %6 : vector<16x128xf32>
    %8 = arith.truncf %1 : vector<16x128xf32> to vector<16x128xbf16>
    %c0_7 = arith.constant 0 : index
    %c0_8 = arith.constant 0 : index
    %9 = vector.load %arg5[%c0_7, %c0_8] : memref<128x256xbf16, #tpu.memory_space<vmem>>, vector<128x256xbf16>
    %cst_9 = arith.constant dense<0.000000e+00> : vector<16x256xf32>
    %10 = tpu.matmul %8, %9, %cst_9 {dimension_numbers = #tpu.dot_dimension_numbers<[1], [0], [0], [1], [0, 0, 1, 1], [], []>} : vector<16x128xbf16>, vector<128x256xbf16>, vector<16x256xf32> -> vector<16x256xf32>
    %c0_10 = arith.constant 0 : index
    %c0_11 = arith.constant 0 : index
    %11 = vector.load %arg6[%c0_10, %c0_11] : memref<1x256xf32, #tpu.memory_space<vmem>>, vector<1x256xf32>
    %12 = vector.broadcast %11 : vector<1x256xf32> to vector<16x256xf32>
    %13 = arith.addf %10, %12 : vector<16x256xf32>
    %14 = vector.shape_cast %7 : vector<16x128xf32> to vector<2x8x128xf32>
    %15 = arith.truncf %14 : vector<2x8x128xf32> to vector<2x8x128xbf16>
    %16 = vector.shape_cast %13 : vector<16x256xf32> to vector<2x8x256xf32>
    %17 = arith.truncf %16 : vector<2x8x256xf32> to vector<2x8x256xbf16>
    %18 = vector.extract_strided_slice %17 {offsets = [0, 0, 0], sizes = [2, 8, 128], strides = [1, 1, 1]} : vector<2x8x256xbf16> to vector<2x8x128xbf16>
    %19 = vector.extract_strided_slice %17 {offsets = [0, 0, 128], sizes = [2, 8, 128], strides = [1, 1, 1]} : vector<2x8x256xbf16> to vector<2x8x128xbf16>
    %cst_12 = arith.constant 0.000000e+00 : f32
    %20 = vector.broadcast %cst_12 : f32 to vector<16x128xf32>
    %21 = vector.extract_strided_slice %15 {offsets = [0, 0, 0], sizes = [2, 8, 32], strides = [1, 1, 1]} : vector<2x8x128xbf16> to vector<2x8x32xbf16>
    %22 = vector.extract_strided_slice %18 {offsets = [0, 0, 0], sizes = [2, 8, 32], strides = [1, 1, 1]} : vector<2x8x128xbf16> to vector<2x8x32xbf16>
    %23 = vector.extract_strided_slice %19 {offsets = [0, 0, 0], sizes = [2, 8, 32], strides = [1, 1, 1]} : vector<2x8x128xbf16> to vector<2x8x32xbf16>
    "tpu.trace_start"() <{level = 10 : i32, message = "bqd,bkd->bqk"}> : () -> ()
    %cst_13 = arith.constant dense<0.000000e+00> : vector<2x8x8xf32>
    %24 = tpu.matmul %21, %22, %cst_13 {dimension_numbers = #tpu.dot_dimension_numbers<[2], [2], [1], [1], [0, 0, 0, 1, 1, 1], [0], [0]>} : vector<2x8x32xbf16>, vector<2x8x32xbf16>, vector<2x8x8xf32> -> vector<2x8x8xf32>
    "tpu.trace_stop"() : () -> ()
    %cst_14 = arith.constant dense<0xFF800000> : vector<2x8xf32>
    %25 = vector.multi_reduction <maximumf>, %24, %cst_14 [2] : vector<2x8x8xf32> to vector<2x8xf32>
    %26 = vector.shape_cast %25 : vector<2x8xf32> to vector<2x8x1xf32>
    %27 = vector.broadcast %26 : vector<2x8x1xf32> to vector<2x8x8xf32>
    %28 = arith.subf %24, %27 : vector<2x8x8xf32>
    %29 = math.exp %28 : vector<2x8x8xf32>
    %cst_15 = arith.constant dense<0.000000e+00> : vector<2x8xf32>
    %30 = vector.multi_reduction <add>, %29, %cst_15 [2] : vector<2x8x8xf32> to vector<2x8xf32>
    %31 = vector.shape_cast %30 : vector<2x8xf32> to vector<2x8x1xf32>
    %32 = tpu.reciprocal %31 {approx = true} : vector<2x8x1xf32> -> vector<2x8x1xf32>
    %33 = arith.truncf %29 : vector<2x8x8xf32> to vector<2x8x8xbf16>
    "tpu.trace_start"() <{level = 10 : i32, message = "bqk,bkd->bqd"}> : () -> ()
    %cst_16 = arith.constant dense<0.000000e+00> : vector<2x8x32xf32>
    %34 = tpu.matmul %33, %23, %cst_16 {dimension_numbers = #tpu.dot_dimension_numbers<[2], [1], [1], [2], [0, 0, 0, 1, 1, 2], [0], [0]>} : vector<2x8x8xbf16>, vector<2x8x32xbf16>, vector<2x8x32xf32> -> vector<2x8x32xf32>
    "tpu.trace_stop"() : () -> ()
    %35 = vector.broadcast %32 : vector<2x8x1xf32> to vector<2x8x32xf32>
    %36 = arith.mulf %34, %35 : vector<2x8x32xf32>
    %37 = vector.shape_cast %36 : vector<2x8x32xf32> to vector<16x32xf32>
    %38 = arith.truncf %37 : vector<16x32xf32> to vector<16x32xbf16>
    %c0_17 = arith.constant 0 : index
    %c0_18 = arith.constant 0 : index
    %39 = vector.load %arg7[%c0_17, %c0_18] : memref<128x128xbf16, #tpu.memory_space<vmem>>, vector<32x128xbf16>
    %cst_19 = arith.constant dense<0.000000e+00> : vector<16x128xf32>
    %40 = tpu.matmul %38, %39, %cst_19 {dimension_numbers = #tpu.dot_dimension_numbers<[1], [0], [0], [1], [0, 0, 1, 1], [], []>} : vector<16x32xbf16>, vector<32x128xbf16>, vector<16x128xf32> -> vector<16x128xf32>
    %41 = arith.addf %20, %40 : vector<16x128xf32>
    %42 = vector.extract_strided_slice %15 {offsets = [0, 0, 32], sizes = [2, 8, 32], strides = [1, 1, 1]} : vector<2x8x128xbf16> to vector<2x8x32xbf16>
    %43 = vector.extract_strided_slice %18 {offsets = [0, 0, 32], sizes = [2, 8, 32], strides = [1, 1, 1]} : vector<2x8x128xbf16> to vector<2x8x32xbf16>
    %44 = vector.extract_strided_slice %19 {offsets = [0, 0, 32], sizes = [2, 8, 32], strides = [1, 1, 1]} : vector<2x8x128xbf16> to vector<2x8x32xbf16>
    "tpu.trace_start"() <{level = 10 : i32, message = "bqd,bkd->bqk"}> : () -> ()
    %cst_20 = arith.constant dense<0.000000e+00> : vector<2x8x8xf32>
    %45 = tpu.matmul %42, %43, %cst_20 {dimension_numbers = #tpu.dot_dimension_numbers<[2], [2], [1], [1], [0, 0, 0, 1, 1, 1], [0], [0]>} : vector<2x8x32xbf16>, vector<2x8x32xbf16>, vector<2x8x8xf32> -> vector<2x8x8xf32>
    "tpu.trace_stop"() : () -> ()
    %cst_21 = arith.constant dense<0xFF800000> : vector<2x8xf32>
    %46 = vector.multi_reduction <maximumf>, %45, %cst_21 [2] : vector<2x8x8xf32> to vector<2x8xf32>
    %47 = vector.shape_cast %46 : vector<2x8xf32> to vector<2x8x1xf32>
    %48 = vector.broadcast %47 : vector<2x8x1xf32> to vector<2x8x8xf32>
    %49 = arith.subf %45, %48 : vector<2x8x8xf32>
    %50 = math.exp %49 : vector<2x8x8xf32>
    %cst_22 = arith.constant dense<0.000000e+00> : vector<2x8xf32>
    %51 = vector.multi_reduction <add>, %50, %cst_22 [2] : vector<2x8x8xf32> to vector<2x8xf32>
    %52 = vector.shape_cast %51 : vector<2x8xf32> to vector<2x8x1xf32>
    %53 = tpu.reciprocal %52 {approx = true} : vector<2x8x1xf32> -> vector<2x8x1xf32>
    %54 = arith.truncf %50 : vector<2x8x8xf32> to vector<2x8x8xbf16>
    "tpu.trace_start"() <{level = 10 : i32, message = "bqk,bkd->bqd"}> : () -> ()
    %cst_23 = arith.constant dense<0.000000e+00> : vector<2x8x32xf32>
    %55 = tpu.matmul %54, %44, %cst_23 {dimension_numbers = #tpu.dot_dimension_numbers<[2], [1], [1], [2], [0, 0, 0, 1, 1, 2], [0], [0]>} : vector<2x8x8xbf16>, vector<2x8x32xbf16>, vector<2x8x32xf32> -> vector<2x8x32xf32>
    "tpu.trace_stop"() : () -> ()
    %56 = vector.broadcast %53 : vector<2x8x1xf32> to vector<2x8x32xf32>
    %57 = arith.mulf %55, %56 : vector<2x8x32xf32>
    %58 = vector.shape_cast %57 : vector<2x8x32xf32> to vector<16x32xf32>
    %59 = arith.truncf %58 : vector<16x32xf32> to vector<16x32xbf16>
    %c32 = arith.constant 32 : index
    %c0_24 = arith.constant 0 : index
    %60 = vector.load %arg7[%c32, %c0_24] : memref<128x128xbf16, #tpu.memory_space<vmem>>, vector<32x128xbf16>
    %cst_25 = arith.constant dense<0.000000e+00> : vector<16x128xf32>
    %61 = tpu.matmul %59, %60, %cst_25 {dimension_numbers = #tpu.dot_dimension_numbers<[1], [0], [0], [1], [0, 0, 1, 1], [], []>} : vector<16x32xbf16>, vector<32x128xbf16>, vector<16x128xf32> -> vector<16x128xf32>
    %62 = arith.addf %41, %61 : vector<16x128xf32>
    %63 = vector.extract_strided_slice %15 {offsets = [0, 0, 64], sizes = [2, 8, 32], strides = [1, 1, 1]} : vector<2x8x128xbf16> to vector<2x8x32xbf16>
    %64 = vector.extract_strided_slice %18 {offsets = [0, 0, 64], sizes = [2, 8, 32], strides = [1, 1, 1]} : vector<2x8x128xbf16> to vector<2x8x32xbf16>
    %65 = vector.extract_strided_slice %19 {offsets = [0, 0, 64], sizes = [2, 8, 32], strides = [1, 1, 1]} : vector<2x8x128xbf16> to vector<2x8x32xbf16>
    "tpu.trace_start"() <{level = 10 : i32, message = "bqd,bkd->bqk"}> : () -> ()
    %cst_26 = arith.constant dense<0.000000e+00> : vector<2x8x8xf32>
    %66 = tpu.matmul %63, %64, %cst_26 {dimension_numbers = #tpu.dot_dimension_numbers<[2], [2], [1], [1], [0, 0, 0, 1, 1, 1], [0], [0]>} : vector<2x8x32xbf16>, vector<2x8x32xbf16>, vector<2x8x8xf32> -> vector<2x8x8xf32>
    "tpu.trace_stop"() : () -> ()
    %cst_27 = arith.constant dense<0xFF800000> : vector<2x8xf32>
    %67 = vector.multi_reduction <maximumf>, %66, %cst_27 [2] : vector<2x8x8xf32> to vector<2x8xf32>
    %68 = vector.shape_cast %67 : vector<2x8xf32> to vector<2x8x1xf32>
    %69 = vector.broadcast %68 : vector<2x8x1xf32> to vector<2x8x8xf32>
    %70 = arith.subf %66, %69 : vector<2x8x8xf32>
    %71 = math.exp %70 : vector<2x8x8xf32>
    %cst_28 = arith.constant dense<0.000000e+00> : vector<2x8xf32>
    %72 = vector.multi_reduction <add>, %71, %cst_28 [2] : vector<2x8x8xf32> to vector<2x8xf32>
    %73 = vector.shape_cast %72 : vector<2x8xf32> to vector<2x8x1xf32>
    %74 = tpu.reciprocal %73 {approx = true} : vector<2x8x1xf32> -> vector<2x8x1xf32>
    %75 = arith.truncf %71 : vector<2x8x8xf32> to vector<2x8x8xbf16>
    "tpu.trace_start"() <{level = 10 : i32, message = "bqk,bkd->bqd"}> : () -> ()
    %cst_29 = arith.constant dense<0.000000e+00> : vector<2x8x32xf32>
    %76 = tpu.matmul %75, %65, %cst_29 {dimension_numbers = #tpu.dot_dimension_numbers<[2], [1], [1], [2], [0, 0, 0, 1, 1, 2], [0], [0]>} : vector<2x8x8xbf16>, vector<2x8x32xbf16>, vector<2x8x32xf32> -> vector<2x8x32xf32>
    "tpu.trace_stop"() : () -> ()
    %77 = vector.broadcast %74 : vector<2x8x1xf32> to vector<2x8x32xf32>
    %78 = arith.mulf %76, %77 : vector<2x8x32xf32>
    %79 = vector.shape_cast %78 : vector<2x8x32xf32> to vector<16x32xf32>
    %80 = arith.truncf %79 : vector<16x32xf32> to vector<16x32xbf16>
    %c64 = arith.constant 64 : index
    %c0_30 = arith.constant 0 : index
    %81 = vector.load %arg7[%c64, %c0_30] : memref<128x128xbf16, #tpu.memory_space<vmem>>, vector<32x128xbf16>
    %cst_31 = arith.constant dense<0.000000e+00> : vector<16x128xf32>
    %82 = tpu.matmul %80, %81, %cst_31 {dimension_numbers = #tpu.dot_dimension_numbers<[1], [0], [0], [1], [0, 0, 1, 1], [], []>} : vector<16x32xbf16>, vector<32x128xbf16>, vector<16x128xf32> -> vector<16x128xf32>
    %83 = arith.addf %62, %82 : vector<16x128xf32>
    %84 = vector.extract_strided_slice %15 {offsets = [0, 0, 96], sizes = [2, 8, 32], strides = [1, 1, 1]} : vector<2x8x128xbf16> to vector<2x8x32xbf16>
    %85 = vector.extract_strided_slice %18 {offsets = [0, 0, 96], sizes = [2, 8, 32], strides = [1, 1, 1]} : vector<2x8x128xbf16> to vector<2x8x32xbf16>
    %86 = vector.extract_strided_slice %19 {offsets = [0, 0, 96], sizes = [2, 8, 32], strides = [1, 1, 1]} : vector<2x8x128xbf16> to vector<2x8x32xbf16>
    "tpu.trace_start"() <{level = 10 : i32, message = "bqd,bkd->bqk"}> : () -> ()
    %cst_32 = arith.constant dense<0.000000e+00> : vector<2x8x8xf32>
    %87 = tpu.matmul %84, %85, %cst_32 {dimension_numbers = #tpu.dot_dimension_numbers<[2], [2], [1], [1], [0, 0, 0, 1, 1, 1], [0], [0]>} : vector<2x8x32xbf16>, vector<2x8x32xbf16>, vector<2x8x8xf32> -> vector<2x8x8xf32>
    "tpu.trace_stop"() : () -> ()
    %cst_33 = arith.constant dense<0xFF800000> : vector<2x8xf32>
    %88 = vector.multi_reduction <maximumf>, %87, %cst_33 [2] : vector<2x8x8xf32> to vector<2x8xf32>
    %89 = vector.shape_cast %88 : vector<2x8xf32> to vector<2x8x1xf32>
    %90 = vector.broadcast %89 : vector<2x8x1xf32> to vector<2x8x8xf32>
    %91 = arith.subf %87, %90 : vector<2x8x8xf32>
    %92 = math.exp %91 : vector<2x8x8xf32>
    %cst_34 = arith.constant dense<0.000000e+00> : vector<2x8xf32>
    %93 = vector.multi_reduction <add>, %92, %cst_34 [2] : vector<2x8x8xf32> to vector<2x8xf32>
    %94 = vector.shape_cast %93 : vector<2x8xf32> to vector<2x8x1xf32>
    %95 = tpu.reciprocal %94 {approx = true} : vector<2x8x1xf32> -> vector<2x8x1xf32>
    %96 = arith.truncf %92 : vector<2x8x8xf32> to vector<2x8x8xbf16>
    "tpu.trace_start"() <{level = 10 : i32, message = "bqk,bkd->bqd"}> : () -> ()
    %cst_35 = arith.constant dense<0.000000e+00> : vector<2x8x32xf32>
    %97 = tpu.matmul %96, %86, %cst_35 {dimension_numbers = #tpu.dot_dimension_numbers<[2], [1], [1], [2], [0, 0, 0, 1, 1, 2], [0], [0]>} : vector<2x8x8xbf16>, vector<2x8x32xbf16>, vector<2x8x32xf32> -> vector<2x8x32xf32>
    "tpu.trace_stop"() : () -> ()
    %98 = vector.broadcast %95 : vector<2x8x1xf32> to vector<2x8x32xf32>
    %99 = arith.mulf %97, %98 : vector<2x8x32xf32>
    %100 = vector.shape_cast %99 : vector<2x8x32xf32> to vector<16x32xf32>
    %101 = arith.truncf %100 : vector<16x32xf32> to vector<16x32xbf16>
    %c96 = arith.constant 96 : index
    %c0_36 = arith.constant 0 : index
    %102 = vector.load %arg7[%c96, %c0_36] : memref<128x128xbf16, #tpu.memory_space<vmem>>, vector<32x128xbf16>
    %cst_37 = arith.constant dense<0.000000e+00> : vector<16x128xf32>
    %103 = tpu.matmul %101, %102, %cst_37 {dimension_numbers = #tpu.dot_dimension_numbers<[1], [0], [0], [1], [0, 0, 1, 1], [], []>} : vector<16x32xbf16>, vector<32x128xbf16>, vector<16x128xf32> -> vector<16x128xf32>
    %104 = arith.addf %83, %103 : vector<16x128xf32>
    %c0_38 = arith.constant 0 : index
    %c0_39 = arith.constant 0 : index
    %105 = vector.load %arg8[%c0_38, %c0_39] : memref<1x128xf32, #tpu.memory_space<vmem>>, vector<1x128xf32>
    %106 = vector.broadcast %105 : vector<1x128xf32> to vector<16x128xf32>
    %107 = arith.addf %104, %106 : vector<16x128xf32>
    %c0_40 = arith.constant 0 : index
    %c0_41 = arith.constant 0 : index
    %108 = vector.load %arg9[%c0_40, %c0_41] : memref<4x128xf32, #tpu.memory_space<vmem>>, vector<4x128xf32>
    %109 = arith.addf %0, %107 : vector<16x128xf32>
    %110 = vector.extract_strided_slice %108 {offsets = [0, 0], sizes = [1, 128], strides = [1, 1]} : vector<4x128xf32> to vector<1x128xf32>
    %111 = vector.extract_strided_slice %108 {offsets = [1, 0], sizes = [1, 128], strides = [1, 1]} : vector<4x128xf32> to vector<1x128xf32>
    %cst_42 = arith.constant dense<0.000000e+00> : vector<16xf32>
    %112 = vector.multi_reduction <add>, %109, %cst_42 [1] : vector<16x128xf32> to vector<16xf32>
    %113 = vector.shape_cast %112 : vector<16xf32> to vector<16x1xf32>
    %cst_43 = arith.constant 1.280000e+02 : f32
    %114 = vector.broadcast %cst_43 : f32 to vector<16x1xf32>
    %115 = arith.divf %113, %114 : vector<16x1xf32>
    %116 = vector.broadcast %115 : vector<16x1xf32> to vector<16x128xf32>
    %117 = arith.subf %109, %116 : vector<16x128xf32>
    %118 = arith.mulf %117, %117 : vector<16x128xf32>
    %cst_44 = arith.constant dense<0.000000e+00> : vector<16xf32>
    %119 = vector.multi_reduction <add>, %118, %cst_44 [1] : vector<16x128xf32> to vector<16xf32>
    %120 = vector.shape_cast %119 : vector<16xf32> to vector<16x1xf32>
    %cst_45 = arith.constant 1.280000e+02 : f32
    %121 = vector.broadcast %cst_45 : f32 to vector<16x1xf32>
    %122 = arith.divf %120, %121 : vector<16x1xf32>
    %cst_46 = arith.constant 9.99999974E-6 : f32
    %123 = vector.broadcast %cst_46 : f32 to vector<16x1xf32>
    %124 = arith.addf %122, %123 : vector<16x1xf32>
    %125 = math.rsqrt %124 : vector<16x1xf32>
    %126 = vector.broadcast %125 : vector<16x1xf32> to vector<16x128xf32>
    %127 = arith.mulf %117, %126 : vector<16x128xf32>
    %128 = vector.broadcast %110 : vector<1x128xf32> to vector<16x128xf32>
    %129 = arith.mulf %127, %128 : vector<16x128xf32>
    %130 = vector.broadcast %111 : vector<1x128xf32> to vector<16x128xf32>
    %131 = arith.addf %129, %130 : vector<16x128xf32>
    %132 = arith.truncf %131 : vector<16x128xf32> to vector<16x128xbf16>
    %cst_47 = arith.constant 0.000000e+00 : f32
    %133 = vector.broadcast %cst_47 : f32 to vector<16x128xf32>
    %c0_48 = arith.constant 0 : index
    %c0_49 = arith.constant 0 : index
    %134 = vector.load %arg10[%c0_48, %c0_49] : memref<128x256xbf16, #tpu.memory_space<vmem>>, vector<128x256xbf16>
    %cst_50 = arith.constant dense<0.000000e+00> : vector<16x256xf32>
    %135 = tpu.matmul %132, %134, %cst_50 {dimension_numbers = #tpu.dot_dimension_numbers<[1], [0], [0], [1], [0, 0, 1, 1], [], []>} : vector<16x128xbf16>, vector<128x256xbf16>, vector<16x256xf32> -> vector<16x256xf32>
    %c0_51 = arith.constant 0 : index
    %c0_52 = arith.constant 0 : index
    %136 = vector.load %arg11[%c0_51, %c0_52] : memref<1x256xf32, #tpu.memory_space<vmem>>, vector<1x256xf32>
    %137 = vector.broadcast %136 : vector<1x256xf32> to vector<16x256xf32>
    %138 = arith.addf %135, %137 : vector<16x256xf32>
    %cst_53 = arith.constant 0.000000e+00 : f32
    %139 = vector.broadcast %cst_53 : f32 to vector<16x256xf32>
    %140 = arith.maximumf %138, %139 : vector<16x256xf32>
    %141 = arith.truncf %140 : vector<16x256xf32> to vector<16x256xbf16>
    %c0_54 = arith.constant 0 : index
    %c0_55 = arith.constant 0 : index
    %142 = vector.load %arg12[%c0_54, %c0_55] : memref<256x128xbf16, #tpu.memory_space<vmem>>, vector<256x128xbf16>
    %cst_56 = arith.constant dense<0.000000e+00> : vector<16x128xf32>
    %143 = tpu.matmul %141, %142, %cst_56 {dimension_numbers = #tpu.dot_dimension_numbers<[1], [0], [0], [1], [0, 0, 1, 1], [], []>} : vector<16x256xbf16>, vector<256x128xbf16>, vector<16x128xf32> -> vector<16x128xf32>
    %144 = arith.addf %133, %143 : vector<16x128xf32>
    %c0_57 = arith.constant 0 : index
    %c0_58 = arith.constant 0 : index
    %145 = vector.load %arg13[%c0_57, %c0_58] : memref<1x128xf32, #tpu.memory_space<vmem>>, vector<1x128xf32>
    %146 = vector.broadcast %145 : vector<1x128xf32> to vector<16x128xf32>
    %147 = arith.addf %144, %146 : vector<16x128xf32>
    %148 = arith.addf %131, %147 : vector<16x128xf32>
    %149 = vector.extract_strided_slice %108 {offsets = [2, 0], sizes = [1, 128], strides = [1, 1]} : vector<4x128xf32> to vector<1x128xf32>
    %150 = vector.extract_strided_slice %108 {offsets = [3, 0], sizes = [1, 128], strides = [1, 1]} : vector<4x128xf32> to vector<1x128xf32>
    %cst_59 = arith.constant dense<0.000000e+00> : vector<16xf32>
    %151 = vector.multi_reduction <add>, %148, %cst_59 [1] : vector<16x128xf32> to vector<16xf32>
    %152 = vector.shape_cast %151 : vector<16xf32> to vector<16x1xf32>
    %cst_60 = arith.constant 1.280000e+02 : f32
    %153 = vector.broadcast %cst_60 : f32 to vector<16x1xf32>
    %154 = arith.divf %152, %153 : vector<16x1xf32>
    %155 = vector.broadcast %154 : vector<16x1xf32> to vector<16x128xf32>
    %156 = arith.subf %148, %155 : vector<16x128xf32>
    %157 = arith.mulf %156, %156 : vector<16x128xf32>
    %cst_61 = arith.constant dense<0.000000e+00> : vector<16xf32>
    %158 = vector.multi_reduction <add>, %157, %cst_61 [1] : vector<16x128xf32> to vector<16xf32>
    %159 = vector.shape_cast %158 : vector<16xf32> to vector<16x1xf32>
    %cst_62 = arith.constant 1.280000e+02 : f32
    %160 = vector.broadcast %cst_62 : f32 to vector<16x1xf32>
    %161 = arith.divf %159, %160 : vector<16x1xf32>
    %cst_63 = arith.constant 9.99999974E-6 : f32
    %162 = vector.broadcast %cst_63 : f32 to vector<16x1xf32>
    %163 = arith.addf %161, %162 : vector<16x1xf32>
    %164 = math.rsqrt %163 : vector<16x1xf32>
    %165 = vector.broadcast %164 : vector<16x1xf32> to vector<16x128xf32>
    %166 = arith.mulf %156, %165 : vector<16x128xf32>
    %167 = vector.broadcast %149 : vector<1x128xf32> to vector<16x128xf32>
    %168 = arith.mulf %166, %167 : vector<16x128xf32>
    %169 = vector.broadcast %150 : vector<1x128xf32> to vector<16x128xf32>
    %170 = arith.addf %168, %169 : vector<16x128xf32>
    %c0_64 = arith.constant 0 : index
    %c0_65 = arith.constant 0 : index
    %171 = vector.load %arg14[%c0_64, %c0_65] : memref<16x128xf32, #tpu.memory_space<vmem>>, vector<16x128xf32>
    tpu.vector_store %arg14[%c0_64, %c0_65], %170 {strides = array<i32>} : memref<16x128xf32, #tpu.memory_space<vmem>>, vector<16x128xf32>,
    return
  }
  func.func @transform_0(%arg0: i32) -> (i32, i32) {
    %c0_i32 = arith.constant 0 : i32
    %c0_i32_0 = arith.constant 0 : i32
    return %arg0, %c0_i32 : i32, i32
  }
  func.func @transform_1(%arg0: i32) -> (i32, i32) {
    %c0_i32 = arith.constant 0 : i32
    %c0_i32_0 = arith.constant 0 : i32
    return %arg0, %c0_i32 : i32, i32
  }
  func.func @transform_2(%arg0: i32) -> (i32, i32) {
    %c0_i32 = arith.constant 0 : i32
    %c0_i32_0 = arith.constant 0 : i32
    %c0_i32_1 = arith.constant 0 : i32
    return %c0_i32, %c0_i32_0 : i32, i32
  }
  func.func @transform_3(%arg0: i32) -> (i32, i32) {
    %c0_i32 = arith.constant 0 : i32
    %c0_i32_0 = arith.constant 0 : i32
    %c0_i32_1 = arith.constant 0 : i32
    return %c0_i32, %c0_i32_0 : i32, i32
  }
  func.func @transform_4(%arg0: i32) -> (i32, i32) {
    %c0_i32 = arith.constant 0 : i32
    %c0_i32_0 = arith.constant 0 : i32
    %c0_i32_1 = arith.constant 0 : i32
    return %c0_i32, %c0_i32_0 : i32, i32
  }
  func.func @transform_5(%arg0: i32) -> (i32, i32) {
    %c0_i32 = arith.constant 0 : i32
    %c0_i32_0 = arith.constant 0 : i32
    %c0_i32_1 = arith.constant 0 : i32
    return %c0_i32, %c0_i32_0 : i32, i32
  }
  func.func @transform_6(%arg0: i32) -> (i32, i32) {
    %c0_i32 = arith.constant 0 : i32
    %c0_i32_0 = arith.constant 0 : i32
    %c0_i32_1 = arith.constant 0 : i32
    return %c0_i32, %c0_i32_0 : i32, i32
  }
  func.func @transform_7(%arg0: i32) -> (i32, i32) {
    %c0_i32 = arith.constant 0 : i32
    %c0_i32_0 = arith.constant 0 : i32
    %c0_i32_1 = arith.constant 0 : i32
    return %c0_i32, %c0_i32_0 : i32, i32
  }
  func.func @transform_8(%arg0: i32) -> (i32, i32) {
    %c0_i32 = arith.constant 0 : i32
    %c0_i32_0 = arith.constant 0 : i32
    %c0_i32_1 = arith.constant 0 : i32
    return %c0_i32, %c0_i32_0 : i32, i32
  }
  func.func @transform_9(%arg0: i32) -> (i32, i32) {
    %c0_i32 = arith.constant 0 : i32
    %c0_i32_0 = arith.constant 0 : i32
    %c0_i32_1 = arith.constant 0 : i32
    return %c0_i32, %c0_i32_0 : i32, i32
  }
  func.func @transform_10(%arg0: i32) -> (i32, i32) {
    %c0_i32 = arith.constant 0 : i32
    %c0_i32_0 = arith.constant 0 : i32
    %c0_i32_1 = arith.constant 0 : i32
    return %c0_i32, %c0_i32_0 : i32, i32
  }
  func.func @transform_11(%arg0: i32) -> (i32, i32) {
    %c0_i32 = arith.constant 0 : i32
    %c0_i32_0 = arith.constant 0 : i32
    %c0_i32_1 = arith.constant 0 : i32
    return %c0_i32, %c0_i32_0 : i32, i32
  }
  func.func @transform_12(%arg0: i32) -> (i32, i32) {
    %c0_i32 = arith.constant 0 : i32
    %c0_i32_0 = arith.constant 0 : i32
    %c0_i32_1 = arith.constant 0 : i32
    return %c0_i32, %c0_i32_0 : i32, i32
  }
  func.func @transform_13(%arg0: i32) -> (i32, i32) {
    %c0_i32 = arith.constant 0 : i32
    %c0_i32_0 = arith.constant 0 : i32
    return %arg0, %c0_i32 : i32, i32
  }
}

</mosaic_0001>

<llo_original>
// kernel: tpu_custom_call.1
$region0: #{tpu_custom_call.1}
  #allocation0 [shape = 'u32[]', space=smem, size = 0x4, offset = 0x4, fixed_abs, tag = 'smem constant byte address 0x4 - core index']
  #allocation1 [shape = 'u32[144,128]{1,0:T(1,128)}', space=vmem, size = 0x12000, scoped, tag = 'internal scratch']
  %s0 = inlined_call_operand.hbm [shape: f32[16,128], index: 0, kind: input, shape index: {}]
  %s1 = inlined_call_operand.hbm [shape: f32[16,128], index: 1, kind: input, shape index: {}]
  %s2 = inlined_call_operand.hbm [shape: bf16[128,128], index: 2, kind: input, shape index: {}]
  %s3 = inlined_call_operand.vmem [shape: f32[1,128], index: 3, kind: input, shape index: {}]
  %s4 = inlined_call_operand.hbm [shape: bf16[128,256], index: 4, kind: input, shape index: {}]
  %s5 = inlined_call_operand.vmem [shape: f32[1,256], index: 5, kind: input, shape index: {}]
  %s6 = inlined_call_operand.hbm [shape: bf16[128,128], index: 6, kind: input, shape index: {}]
  %s7 = inlined_call_operand.vmem [shape: f32[1,128], index: 7, kind: input, shape index: {}]
  %s8 = inlined_call_operand.vmem [shape: f32[4,128], index: 8, kind: input, shape index: {}]
  %s9 = inlined_call_operand.hbm [shape: bf16[128,256], index: 9, kind: input, shape index: {}]
  %s10 = inlined_call_operand.vmem [shape: f32[1,256], index: 10, kind: input, shape index: {}]
  %s11 = inlined_call_operand.hbm [shape: bf16[256,128], index: 11, kind: input, shape index: {}]
  %s12 = inlined_call_operand.vmem [shape: f32[1,128], index: 12, kind: input, shape index: {}]
  %s13 = inlined_call_operand.hbm [shape: f32[16,128], index: 13, kind: output, shape index: {}]
  %s14 = sld [smem:[#allocation0]]
  $region90: #{tpu_custom_call.1} parent=0
    _
  %s16 = ssub.s32 1, %s14
  %s17 = scalar_select 0, %s16, %s14
  $region1: #{tpu_custom_call.1} parent=0
    #allocation2 [shape = 'u8[8192]{0}', space=vmem, size = 0x2000, scoped, tag = 'input window, operand 0, single buffered']
    #allocation3 [shape = 's32[1]{0}', space=sflag, size = 0x4, scoped, tag = 'scoped memory for tpu_custom_call.1']
    #allocation4 [shape = 's32[1]{0}', space=sflag, size = 0x4, scoped, tag = 'scoped memory for tpu_custom_call.1']
    #allocation5 [shape = 'u8[8192]{0}', space=vmem, size = 0x2000, scoped, tag = 'input window, operand 1, single buffered']
    #allocation6 [shape = 's32[1]{0}', space=sflag, size = 0x4, scoped, tag = 'scoped memory for tpu_custom_call.1']
    #allocation7 [shape = 'u8[32768]{0}', space=vmem, size = 0x8000, scoped, tag = 'input window, operand 2, single buffered']
    #allocation8 [shape = 'u8[65536]{0}', space=vmem, size = 0x10000, scoped, tag = 'input window, operand 4, single buffered']
    #allocation9 [shape = 's32[1]{0}', space=sflag, size = 0x4, scoped, tag = 'scoped memory for tpu_custom_call.1']
    #allocation10 [shape = 'u8[32768]{0}', space=vmem, size = 0x8000, scoped, tag = 'input window, operand 6, single buffered']
    #allocation11 [shape = 'u8[65536]{0}', space=vmem, size = 0x10000, scoped, tag = 'input window, operand 9, single buffered']
    #allocation12 [shape = 's32[1]{0}', space=sflag, size = 0x4, scoped, tag = 'scoped memory for tpu_custom_call.1']
    #allocation13 [shape = 'u8[65536]{0}', space=vmem, size = 0x10000, scoped, tag = 'input window, operand 11, single buffered']
    #allocation14 [shape = 'u8[8192]{0}', space=vmem, size = 0x2000, scoped, tag = 'output window, operand 0, single buffered']
    %18 = vsyncpa [#allocation3], 0
    %19 = vsyncpa [#allocation6], 0
    %20 = vsyncpa [#allocation9], 0
    %21 = vsyncpa [#allocation12], 0
    %22 = vsyncpa [#allocation4], 0
    // Predicated region
    $region2: #{tpu_custom_call.1} parent=1 // pred_check
      _
    $region3: #{tpu_custom_call.1} parent=1 // pred_check_branch
      %24 = sbr.rel (0) target = $region5
    $region4: #{tpu_custom_call.1} parent=1 // pred_region
      %s26 = ssub.s32 256, 256
      %27 = vsyncadd [#allocation3], %s26
      %s28 = sshll.u32 [#allocation2], 4
      %s29 = int_to_ptr.vmem [resolvable:$true] %s28
      %34 = dma.hbm_to_vmem [thread:$0]  %s0, 256, %s29, [#allocation3], 128, 128, 8
    $region5: #{tpu_custom_call.1} parent=1 // pred_fallthru
      _
    // Predicated region
    $region6: #{tpu_custom_call.1} parent=1 // pred_check
      _
    $region7: #{tpu_custom_call.1} parent=1 // pred_check_branch
      %36 = sbr.rel (0) target = $region9
    $region8: #{tpu_custom_call.1} parent=1 // pred_region
      %s38 = ssub.s32 256, 256
      %39 = vsyncadd [#allocation6], %s38
      %s40 = sshll.u32 [#allocation5], 4
      %s41 = int_to_ptr.vmem [resolvable:$true] %s40
      %46 = dma.hbm_to_vmem [thread:$0]  %s1, 256, %s41, [#allocation6], 128, 128, 8
    $region9: #{tpu_custom_call.1} parent=1 // pred_fallthru
      _
    // Predicated region
    $region10: #{tpu_custom_call.1} parent=1 // pred_check
      _
    $region11: #{tpu_custom_call.1} parent=1 // pred_check_branch
      %48 = sbr.rel (0) target = $region13
    $region12: #{tpu_custom_call.1} parent=1 // pred_region
      %s50 = ssub.s32 1024, 1024
      %51 = vsyncadd [#allocation6], %s50
      %s52 = sshll.u32 [#allocation7], 4
      %s53 = int_to_ptr.vmem [resolvable:$true] %s52
      %58 = dma.hbm_to_vmem [thread:$0]  %s2, 1024, %s53, [#allocation6], 64, 64, 4
    $region13: #{tpu_custom_call.1} parent=1 // pred_fallthru
      _
    // Predicated region
    $region14: #{tpu_custom_call.1} parent=1 // pred_check
      _
    $region15: #{tpu_custom_call.1} parent=1 // pred_check_branch
      %60 = sbr.rel (0) target = $region17
    $region16: #{tpu_custom_call.1} parent=1 // pred_region
      _
    $region17: #{tpu_custom_call.1} parent=1 // pred_fallthru
      _
    // Predicated region
    $region18: #{tpu_custom_call.1} parent=1 // pred_check
      _
    $region19: #{tpu_custom_call.1} parent=1 // pred_check_branch
      %62 = sbr.rel (0) target = $region21
    $region20: #{tpu_custom_call.1} parent=1 // pred_region
      %s64 = ssub.s32 2048, 2048
      %65 = vsyncadd [#allocation9], %s64
      %s66 = sshll.u32 [#allocation8], 4
      %s67 = int_to_ptr.vmem [resolvable:$true] %s66
      %72 = dma.hbm_to_vmem [thread:$0]  %s4, 2048, %s67, [#allocation9], 128, 128, 8
    $region21: #{tpu_custom_call.1} parent=1 // pred_fallthru
      _
    // Predicated region
    $region22: #{tpu_custom_call.1} parent=1 // pred_check
      _
    $region23: #{tpu_custom_call.1} parent=1 // pred_check_branch
      %74 = sbr.rel (0) target = $region25
    $region24: #{tpu_custom_call.1} parent=1 // pred_region
      _
    $region25: #{tpu_custom_call.1} parent=1 // pred_fallthru
      _
    // Predicated region
    $region26: #{tpu_custom_call.1} parent=1 // pred_check
      _
    $region27: #{tpu_custom_call.1} parent=1 // pred_check_branch
      %76 = sbr.rel (0) target = $region29
    $region28: #{tpu_custom_call.1} parent=1 // pred_region
      %s78 = ssub.s32 1024, 1024
      %79 = vsyncadd [#allocation9], %s78
      %s80 = sshll.u32 [#allocation10], 4
      %s81 = int_to_ptr.vmem [resolvable:$true] %s80
      %86 = dma.hbm_to_vmem [thread:$0]  %s6, 1024, %s81, [#allocation9], 64, 64, 4
    $region29: #{tpu_custom_call.1} parent=1 // pred_fallthru
      _
    // Predicated region
    $region30: #{tpu_custom_call.1} parent=1 // pred_check
      _
    $region31: #{tpu_custom_call.1} parent=1 // pred_check_branch
      %88 = sbr.rel (0) target = $region33
    $region32: #{tpu_custom_call.1} parent=1 // pred_region
      _
    $region33: #{tpu_custom_call.1} parent=1 // pred_fallthru
      _
    // Predicated region
    $region34: #{tpu_custom_call.1} parent=1 // pred_check
      _
    $region35: #{tpu_custom_call.1} parent=1 // pred_check_branch
      %90 = sbr.rel (0) target = $region37
    $region36: #{tpu_custom_call.1} parent=1 // pred_region
      _
    $region37: #{tpu_custom_call.1} parent=1 // pred_fallthru
      _
    // Predicated region
    $region38: #{tpu_custom_call.1} parent=1 // pred_check
      _
    $region39: #{tpu_custom_call.1} parent=1 // pred_check_branch
      %92 = sbr.rel (0) target = $region41
    $region40: #{tpu_custom_call.1} parent=1 // pred_region
      %s94 = ssub.s32 2048, 2048
      %95 = vsyncadd [#allocation12], %s94
      %s96 = sshll.u32 [#allocation11], 4
      %s97 = int_to_ptr.vmem [resolvable:$true] %s96
      %102 = dma.hbm_to_vmem [thread:$0]  %s9, 2048, %s97, [#allocation12], 128, 128, 8
    $region41: #{tpu_custom_call.1} parent=1 // pred_fallthru
      _
    // Predicated region
    $region42: #{tpu_custom_call.1} parent=1 // pred_check
      _
    $region43: #{tpu_custom_call.1} parent=1 // pred_check_branch
      %104 = sbr.rel (0) target = $region45
    $region44: #{tpu_custom_call.1} parent=1 // pred_region
      _
    $region45: #{tpu_custom_call.1} parent=1 // pred_fallthru
      _
    // Predicated region
    $region46: #{tpu_custom_call.1} parent=1 // pred_check
      _
    $region47: #{tpu_custom_call.1} parent=1 // pred_check_branch
      %106 = sbr.rel (0) target = $region49
    $region48: #{tpu_custom_call.1} parent=1 // pred_region
      %s108 = ssub.s32 2048, 2048
      %109 = vsyncadd [#allocation12], %s108
      %s110 = sshll.u32 [#allocation13], 4
      %s111 = int_to_ptr.vmem [resolvable:$true] %s110
      %116 = dma.hbm_to_vmem [thread:$0]  %s11, 2048, %s111, [#allocation12], 64, 64, 4
    $region49: #{tpu_custom_call.1} parent=1 // pred_fallthru
      _
    // Predicated region
    $region50: #{tpu_custom_call.1} parent=1 // pred_check
      _
    $region51: #{tpu_custom_call.1} parent=1 // pred_check_branch
      %118 = sbr.rel (0) target = $region53
    $region52: #{tpu_custom_call.1} parent=1 // pred_region
      _
    $region53: #{tpu_custom_call.1} parent=1 // pred_fallthru
      _
    // Predicated region
    $region54: #{tpu_custom_call.1} parent=1 // pred_check
      _
    $region55: #{tpu_custom_call.1} parent=1 // pred_check_branch
      %120 = sbr.rel (0) target = $region57
    $region56: #{tpu_custom_call.1} parent=1 // pred_region
      %121 = dma.done [#allocation3], 256
    $region57: #{tpu_custom_call.1} parent=1 // pred_fallthru
      _
    // Predicated region
    $region58: #{tpu_custom_call.1} parent=1 // pred_check
      _
    $region59: #{tpu_custom_call.1} parent=1 // pred_check_branch
      %123 = sbr.rel (0) target = $region61
    $region60: #{tpu_custom_call.1} parent=1 // pred_region
      %124 = dma.done [#allocation6], 256
    $region61: #{tpu_custom_call.1} parent=1 // pred_fallthru
      _
    // Predicated region
    $region62: #{tpu_custom_call.1} parent=1 // pred_check
      _
    $region63: #{tpu_custom_call.1} parent=1 // pred_check_branch
      %126 = sbr.rel (0) target = $region65
    $region64: #{tpu_custom_call.1} parent=1 // pred_region
      %127 = dma.done [#allocation6], 1024
    $region65: #{tpu_custom_call.1} parent=1 // pred_fallthru
      _
    // Predicated region
    $region66: #{tpu_custom_call.1} parent=1 // pred_check
      _
    $region67: #{tpu_custom_call.1} parent=1 // pred_check_branch
      %129 = sbr.rel (0) target = $region69
    $region68: #{tpu_custom_call.1} parent=1 // pred_region
      %130 = dma.done [#allocation9], 2048
    $region69: #{tpu_custom_call.1} parent=1 // pred_fallthru
      _
    // Predicated region
    $region70: #{tpu_custom_call.1} parent=1 // pred_check
      _
    $region71: #{tpu_custom_call.1} parent=1 // pred_check_branch
      %132 = sbr.rel (0) target = $region73
    $region72: #{tpu_custom_call.1} parent=1 // pred_region
      %133 = dma.done [#allocation9], 1024
    $region73: #{tpu_custom_call.1} parent=1 // pred_fallthru
      _
    // Predicated region
    $region74: #{tpu_custom_call.1} parent=1 // pred_check
      _
    $region75: #{tpu_custom_call.1} parent=1 // pred_check_branch
      %135 = sbr.rel (0) target = $region77
    $region76: #{tpu_custom_call.1} parent=1 // pred_region
      %136 = dma.done [#allocation12], 2048
    $region77: #{tpu_custom_call.1} parent=1 // pred_fallthru
      _
    // Predicated region
    $region78: #{tpu_custom_call.1} parent=1 // pred_check
      _
    $region79: #{tpu_custom_call.1} parent=1 // pred_check_branch
      %138 = sbr.rel (0) target = $region81
    $region80: #{tpu_custom_call.1} parent=1 // pred_region
      %139 = dma.done [#allocation12], 2048
    $region81: #{tpu_custom_call.1} parent=1 // pred_fallthru
      _
    %v141 = vld [vmem:[#allocation2] sm:$0xff]
    %v142 = vld [vmem:[#allocation2 + $0x8] sm:$0xff]
    %v143 = vld [vmem:[#allocation5] sm:$0xff]
    %v144 = vld [vmem:[#allocation5 + $0x8] sm:$0xff]
    %v145 = vpack.c.bf16 %v142, %v141
    %v146 = vld [vmem:[#allocation7] sm:$0xf]
    %v147 = vld [vmem:[#allocation7 + $0x4] sm:$0xf]
    %v148 = vld [vmem:[#allocation7 + $0x8] sm:$0xf]
    %v149 = vld [vmem:[#allocation7 + $0xc] sm:$0xf]
    %v150 = vld [vmem:[#allocation7 + $0x10] sm:$0xf]
    %v151 = vld [vmem:[#allocation7 + $0x14] sm:$0xf]
    %v152 = vld [vmem:[#allocation7 + $0x18] sm:$0xf]
    %v153 = vld [vmem:[#allocation7 + $0x1c] sm:$0xf]
    %v154 = vld [vmem:[#allocation7 + $0x20] sm:$0xf]
    %v155 = vld [vmem:[#allocation7 + $0x24] sm:$0xf]
    %v156 = vld [vmem:[#allocation7 + $0x28] sm:$0xf]
    %v157 = vld [vmem:[#allocation7 + $0x2c] sm:$0xf]
    %v158 = vld [vmem:[#allocation7 + $0x30] sm:$0xf]
    %v159 = vld [vmem:[#allocation7 + $0x34] sm:$0xf]
    %v160 = vld [vmem:[#allocation7 + $0x38] sm:$0xf]
    %v161 = vld [vmem:[#allocation7 + $0x3c] sm:$0xf]
    %v162 = vld [vmem:[%s3] sm:$0x1]
    %v164 = vlaneseq
    %v165 = vshrl.u32 %v164, 7
    %v166 = vsub.s32 0, %v165
    %v167 = vrot.slane %v162, %v166
    %v185 = vunpack.c.l.b16 %v146
    %v186 = vunpack.c.l.b16 %v147
    %v187 = vunpack.c.l.b16 %v148
    %v188 = vunpack.c.l.b16 %v149
    %v189 = vunpack.c.l.b16 %v150
    %v190 = vunpack.c.l.b16 %v151
    %v191 = vunpack.c.l.b16 %v152
    %v192 = vunpack.c.l.b16 %v153
    %v193 = vunpack.c.l.b16 %v154
    %v194 = vunpack.c.l.b16 %v155
    %v195 = vunpack.c.l.b16 %v156
    %v196 = vunpack.c.l.b16 %v157
    %v197 = vunpack.c.l.b16 %v158
    %v198 = vunpack.c.l.b16 %v159
    %v199 = vunpack.c.l.b16 %v160
    %v200 = vunpack.c.l.b16 %v161
    %v201 = vpack.c.b16 %v186, %v185
    %v202 = vpack.c.b16 %v188, %v187
    %v203 = vpack.c.b16 %v190, %v189
    %v204 = vpack.c.b16 %v192, %v191
    %v205 = vpack.c.b16 %v194, %v193
    %v206 = vpack.c.b16 %v196, %v195
    %v207 = vpack.c.b16 %v198, %v197
    %v208 = vpack.c.b16 %v200, %v199
    %217 = vmatprep.subr.bf16.mxu0 0
    %218 = vmatpush1.bf16.msra.mxu0 %v201
    %219 = vmatprep.subr.bf16.mxu0 0
    %220 = vmatpush1.bf16.msra.mxu0 %v202
    %221 = vmatprep.subr.bf16.mxu0 0
    %222 = vmatpush1.bf16.msra.mxu0 %v203
    %223 = vmatprep.subr.bf16.mxu0 0
    %224 = vmatpush1.bf16.msra.mxu0 %v204
    %225 = vmatprep.subr.bf16.mxu0 0
    %226 = vmatpush1.bf16.msra.mxu0 %v205
    %227 = vmatprep.subr.bf16.mxu0 0
    %228 = vmatpush1.bf16.msra.mxu0 %v206
    %229 = vmatprep.subr.bf16.mxu0 0
    %230 = vmatpush1.bf16.msra.mxu0 %v207
    %231 = vmatprep.subr.bf16.mxu0 0
    %232 = vmatpush1.bf16.msra.mxu0 %v208
    %233 = vmatprep.subr.bf16.mxu0 0
    %234 = vmatpush1.bf16.msra.mxu0 0
    %235 = vmatprep.subr.bf16.mxu0 0
    %236 = vmatpush1.bf16.msra.mxu0 0
    %237 = vmatprep.subr.bf16.mxu0 0
    %238 = vmatpush1.bf16.msra.mxu0 0
    %239 = vmatprep.subr.bf16.mxu0 0
    %240 = vmatpush1.bf16.msra.mxu0 0
    %241 = vmatprep.subr.bf16.mxu0 0
    %242 = vmatpush1.bf16.msra.mxu0 0
    %243 = vmatprep.subr.bf16.mxu0 0
    %244 = vmatpush1.bf16.msra.mxu0 0
    %245 = vmatprep.subr.bf16.mxu0 0
    %246 = vmatpush1.bf16.msra.mxu0 0
    %247 = vmatprep.subr.bf16.mxu0 0
    %248 = vmatpush1.bf16.msra.mxu0 0
    %249 = vmatprep.mubr.bf16.mxu0 0
    %250 = vmatmul.mubr.bf16.gmra.mrb[0].mxu0 %v145
    %v251 = vpop.f32.mrb[0].mxu0
    %v252 = vadd.f32 %v167, %v251
    %v253 = vpop.f32.mrb[0].mxu0
    %v254 = vpop.f32.mrb[0].mxu0
    %v255 = vadd.f32 %v167, %v254
    %v256 = vpop.f32.mrb[0].mxu0
    %257 = vdwg.mxu0
    %v258 = vpack.c.bf16 %v144, %v143
    %v259 = vld [vmem:[#allocation8] sm:$0xff]
    %v260 = vld [vmem:[#allocation8 + $0x8] sm:$0xff]
    %v261 = vld [vmem:[#allocation8 + $0x10] sm:$0xff]
    %v262 = vld [vmem:[#allocation8 + $0x18] sm:$0xff]
    %v263 = vld [vmem:[#allocation8 + $0x20] sm:$0xff]
    %v264 = vld [vmem:[#allocation8 + $0x28] sm:$0xff]
    %v265 = vld [vmem:[#allocation8 + $0x30] sm:$0xff]
    %v266 = vld [vmem:[#allocation8 + $0x38] sm:$0xff]
    %v267 = vld [vmem:[#allocation8 + $0x40] sm:$0xff]
    %v268 = vld [vmem:[#allocation8 + $0x48] sm:$0xff]
    %v269 = vld [vmem:[#allocation8 + $0x50] sm:$0xff]
    %v270 = vld [vmem:[#allocation8 + $0x58] sm:$0xff]
    %v271 = vld [vmem:[#allocation8 + $0x60] sm:$0xff]
    %v272 = vld [vmem:[#allocation8 + $0x68] sm:$0xff]
    %v273 = vld [vmem:[#allocation8 + $0x70] sm:$0xff]
    %v274 = vld [vmem:[#allocation8 + $0x78] sm:$0xff]
    %v275 = vld [vmem:[%s5] sm:$0x3]
    %v277 = vlaneseq
    %v278 = vshrl.u32 %v277, 7
    %v279 = vsub.s32 0, %v278
    %v280 = vrot.slane %v275, %v279
    %v281 = vlaneseq
    %v282 = vshrl.u32 %v281, 7
    %v283 = vsub.s32 1, %v282
    %v284 = vrot.slane %v275, %v283
    %v303 = vunpack.c.l.b16 %v259
    %v304 = vunpack.c.h.b16 %v259
    %v305 = vunpack.c.l.b16 %v260
    %v306 = vunpack.c.h.b16 %v260
    %v307 = vunpack.c.l.b16 %v261
    %v308 = vunpack.c.h.b16 %v261
    %v309 = vunpack.c.l.b16 %v262
    %v310 = vunpack.c.h.b16 %v262
    %v311 = vunpack.c.l.b16 %v263
    %v312 = vunpack.c.h.b16 %v263
    %v313 = vunpack.c.l.b16 %v264
    %v314 = vunpack.c.h.b16 %v264
    %v315 = vunpack.c.l.b16 %v265
    %v316 = vunpack.c.h.b16 %v265
    %v317 = vunpack.c.l.b16 %v266
    %v318 = vunpack.c.h.b16 %v266
    %v319 = vunpack.c.l.b16 %v267
    %v320 = vunpack.c.h.b16 %v267
    %v321 = vunpack.c.l.b16 %v268
    %v322 = vunpack.c.h.b16 %v268
    %v323 = vunpack.c.l.b16 %v269
    %v324 = vunpack.c.h.b16 %v269
    %v325 = vunpack.c.l.b16 %v270
    %v326 = vunpack.c.h.b16 %v270
    %v327 = vunpack.c.l.b16 %v271
    %v328 = vunpack.c.h.b16 %v271
    %v329 = vunpack.c.l.b16 %v272
    %v330 = vunpack.c.h.b16 %v272
    %v331 = vunpack.c.l.b16 %v273
    %v332 = vunpack.c.h.b16 %v273
    %v333 = vunpack.c.l.b16 %v274
    %v334 = vunpack.c.h.b16 %v274
    %v335 = vpack.c.b16 %v305, %v303
    %v336 = vpack.c.b16 %v306, %v304
    %v337 = vpack.c.b16 %v309, %v307
    %v338 = vpack.c.b16 %v310, %v308
    %v339 = vpack.c.b16 %v313, %v311
    %v340 = vpack.c.b16 %v314, %v312
    %v341 = vpack.c.b16 %v317, %v315
    %v342 = vpack.c.b16 %v318, %v316
    %v343 = vpack.c.b16 %v321, %v319
    %v344 = vpack.c.b16 %v322, %v320
    %v345 = vpack.c.b16 %v325, %v323
    %v346 = vpack.c.b16 %v326, %v324
    %v347 = vpack.c.b16 %v329, %v327
    %v348 = vpack.c.b16 %v330, %v328
    %v349 = vpack.c.b16 %v333, %v331
    %v350 = vpack.c.b16 %v334, %v332
    %367 = vmatprep.subr.bf16.mxu0 %v336
    %368 = vmatpush1.bf16.msra.mxu0 %v335
    %369 = vmatprep.subr.bf16.mxu0 %v338
    %370 = vmatpush1.bf16.msra.mxu0 %v337
    %371 = vmatprep.subr.bf16.mxu0 %v340
    %372 = vmatpush1.bf16.msra.mxu0 %v339
    %373 = vmatprep.subr.bf16.mxu0 %v342
    %374 = vmatpush1.bf16.msra.mxu0 %v341
    %375 = vmatprep.subr.bf16.mxu0 %v344
    %376 = vmatpush1.bf16.msra.mxu0 %v343
    %377 = vmatprep.subr.bf16.mxu0 %v346
    %378 = vmatpush1.bf16.msra.mxu0 %v345
    %379 = vmatprep.subr.bf16.mxu0 %v348
    %380 = vmatpush1.bf16.msra.mxu0 %v347
    %381 = vmatprep.subr.bf16.mxu0 %v350
    %382 = vmatpush1.bf16.msra.mxu0 %v349
    %383 = vmatprep.subr.bf16.mxu0 0
    %384 = vmatpush1.bf16.msra.mxu0 0
    %385 = vmatprep.subr.bf16.mxu0 0
    %386 = vmatpush1.bf16.msra.mxu0 0
    %387 = vmatprep.subr.bf16.mxu0 0
    %388 = vmatpush1.bf16.msra.mxu0 0
    %389 = vmatprep.subr.bf16.mxu0 0
    %390 = vmatpush1.bf16.msra.mxu0 0
    %391 = vmatprep.subr.bf16.mxu0 0
    %392 = vmatpush1.bf16.msra.mxu0 0
    %393 = vmatprep.subr.bf16.mxu0 0
    %394 = vmatpush1.bf16.msra.mxu0 0
    %395 = vmatprep.subr.bf16.mxu0 0
    %396 = vmatpush1.bf16.msra.mxu0 0
    %397 = vmatprep.subr.bf16.mxu0 0
    %398 = vmatpush1.bf16.msra.mxu0 0
    %399 = vmatprep.mubr.bf16.mxu0 0
    %400 = vmatmul.mubr.bf16.gmra.mrb[0].mxu0 %v258
    %v401 = vpop.f32.mrb[0].mxu0
    %v402 = vadd.f32 %v280, %v401
    %v403 = vpop.f32.mrb[0].mxu0
    %v404 = vadd.f32 %v284, %v403
    %v405 = vpop.f32.mrb[0].mxu0
    %v406 = vadd.f32 %v280, %v405
    %v407 = vpop.f32.mrb[0].mxu0
    %v408 = vadd.f32 %v284, %v407
    %409 = vdwg.mxu0
    %v410 = vpack.c.bf16 %v252, %v252
    %v411 = vpack.c.bf16 %v255, %v255
    %v412 = vpack.c.bf16 %v402, %v402
    %v413 = vpack.c.bf16 %v404, %v404
    %v414 = vpack.c.bf16 %v406, %v406
    %v415 = vpack.c.bf16 %v408, %v408
    %vm416 = vcmask 261120
    %v418 = vsel %vm416, %v410, 0
    %v421 = vsel %vm416, %v412, 0
    %423 = vmatprep.subr.bf16.mxu0 0
    %424 = vmatpush1.bf16.xpose.msra.mxu0 %v421
    %425 = vmatprep.subr.bf16.mxu0 0
    %426 = vmatpush1.bf16.xpose.msra.mxu0 0
    %427 = vmatprep.subr.bf16.mxu0 0
    %428 = vmatpush1.bf16.xpose.msra.mxu0 0
    %429 = vmatprep.subr.bf16.mxu0 0
    %430 = vmatpush1.bf16.xpose.msra.mxu0 0
    %431 = vmatprep.subr.bf16.mxu0 0
    %432 = vmatpush1.bf16.xpose.msra.mxu0 0
    %433 = vmatprep.subr.bf16.mxu0 0
    %434 = vmatpush1.bf16.xpose.msra.mxu0 0
    %435 = vmatprep.subr.bf16.mxu0 0
    %436 = vmatpush1.bf16.xpose.msra.mxu0 0
    %437 = vmatprep.subr.bf16.mxu0 0
    %438 = vmatpush1.bf16.xpose.msra.mxu0 0
    %439 = vmatprep.subr.bf16.mxu0 0
    %440 = vmatpush1.bf16.xpose.msra.mxu0 0
    %441 = vmatprep.subr.bf16.mxu0 0
    %442 = vmatpush1.bf16.xpose.msra.mxu0 0
    %443 = vmatprep.subr.bf16.mxu0 0
    %444 = vmatpush1.bf16.xpose.msra.mxu0 0
    %445 = vmatprep.subr.bf16.mxu0 0
    %446 = vmatpush1.bf16.xpose.msra.mxu0 0
    %447 = vmatprep.subr.bf16.mxu0 0
    %448 = vmatpush1.bf16.xpose.msra.mxu0 0
    %449 = vmatprep.subr.bf16.mxu0 0
    %450 = vmatpush1.bf16.xpose.msra.mxu0 0
    %451 = vmatprep.subr.bf16.mxu0 0
    %452 = vmatpush1.bf16.xpose.msra.mxu0 0
    %453 = vmatprep.subr.bf16.mxu0 0
    %454 = vmatpush1.bf16.xpose.msra.mxu0 0
    %455 = vmatprep.mubr.bf16.mxu0 0
    %456 = vmatmul.mubr.bf16.gmra.mrb[0].mxu0 %v418
    %v457 = vpop.f32.mrb[0].mxu0
    %v458 = vadd.f32 0.0, %v457
    %v459 = vpop.f32.mrb[0].mxu0
    %v460 = vpop.f32.mrb[0].mxu0
    %v461 = vpop.f32.mrb[0].mxu0
    %462 = vdwg.mxu0
    %v464 = vsel %vm416, %v411, 0
    %v467 = vsel %vm416, %v414, 0
    %469 = vmatprep.subr.bf16.mxu0 0
    %470 = vmatpush1.bf16.xpose.msra.mxu0 %v467
    %471 = vmatprep.subr.bf16.mxu0 0
    %472 = vmatpush1.bf16.xpose.msra.mxu0 0
    %473 = vmatprep.subr.bf16.mxu0 0
    %474 = vmatpush1.bf16.xpose.msra.mxu0 0
    %475 = vmatprep.subr.bf16.mxu0 0
    %476 = vmatpush1.bf16.xpose.msra.mxu0 0
    %477 = vmatprep.subr.bf16.mxu0 0
    %478 = vmatpush1.bf16.xpose.msra.mxu0 0
    %479 = vmatprep.subr.bf16.mxu0 0
    %480 = vmatpush1.bf16.xpose.msra.mxu0 0
    %481 = vmatprep.subr.bf16.mxu0 0
    %482 = vmatpush1.bf16.xpose.msra.mxu0 0
    %483 = vmatprep.subr.bf16.mxu0 0
    %484 = vmatpush1.bf16.xpose.msra.mxu0 0
    %485 = vmatprep.subr.bf16.mxu0 0
    %486 = vmatpush1.bf16.xpose.msra.mxu0 0
    %487 = vmatprep.subr.bf16.mxu0 0
    %488 = vmatpush1.bf16.xpose.msra.mxu0 0
    %489 = vmatprep.subr.bf16.mxu0 0
    %490 = vmatpush1.bf16.xpose.msra.mxu0 0
    %491 = vmatprep.subr.bf16.mxu0 0
    %492 = vmatpush1.bf16.xpose.msra.mxu0 0
    %493 = vmatprep.subr.bf16.mxu0 0
    %494 = vmatpush1.bf16.xpose.msra.mxu0 0
    %495 = vmatprep.subr.bf16.mxu0 0
    %496 = vmatpush1.bf16.xpose.msra.mxu0 0
    %497 = vmatprep.subr.bf16.mxu0 0
    %498 = vmatpush1.bf16.xpose.msra.mxu0 0
    %499 = vmatprep.subr.bf16.mxu0 0
    %500 = vmatpush1.bf16.xpose.msra.mxu0 0
    %501 = vmatprep.mubr.bf16.mxu0 0
    %502 = vmatmul.mubr.bf16.gmra.mrb[0].mxu0 %v464
    %v503 = vpop.f32.mrb[0].mxu0
    %v504 = vadd.f32 0.0, %v503
    %v505 = vpop.f32.mrb[0].mxu0
    %v506 = vpop.f32.mrb[0].mxu0
    %v507 = vpop.f32.mrb[0].mxu0
    %508 = vdwg.mxu0
    %vm509 = vcmask 64512
    %v510 = vsel %vm509, %v458, -inf
    %511 = vmax.xlane.f32.xlu0 %v510
    %v512 = vpop.xlane.xlu0 %511
    %v513 = vsel %vm509, %v504, -inf
    %514 = vmax.xlane.f32.xlu0 %v513
    %v515 = vpop.xlane.xlu0 %514
    %v516 = vsub.f32 %v458, %v512
    %v517 = vsub.f32 %v504, %v515
    %v518 = vmul.f32 %v516, 1.442695
    %v519 = vpow.pop %v518
    %v520 = vmul.f32 %v517, 1.442695
    %v521 = vpow.pop %v520
    %v522 = vsel %vm509, %v519, 0.0
    %523 = vadd.xlane.f32.xlu0 %v522
    %v524 = vpop.xlane.xlu0 %523
    %v525 = vsel %vm509, %v521, 0.0
    %526 = vadd.xlane.f32.xlu0 %v525
    %v527 = vpop.xlane.xlu0 %526
    %v528 = vrcp.pop %v524
    %v529 = vrcp.pop %v527
    %v530 = vpack.c.bf16 %v519, %v519
    %v531 = vpack.c.bf16 %v521, %v521
    %v533 = vsel %vm509, %v530, 0
    %vm535 = vcmask 1043456
    %v537 = vsel %vm535, %v413, 0
    %539 = vmatprep.subr.bf16.mxu0 0
    %540 = vmatpush1.bf16.msra.mxu0 %v537
    %541 = vmatprep.subr.bf16.mxu0 0
    %542 = vmatpush1.bf16.msra.mxu0 0
    %543 = vmatprep.subr.bf16.mxu0 0
    %544 = vmatpush1.bf16.msra.mxu0 0
    %545 = vmatprep.subr.bf16.mxu0 0
    %546 = vmatpush1.bf16.msra.mxu0 0
    %547 = vmatprep.subr.bf16.mxu0 0
    %548 = vmatpush1.bf16.msra.mxu0 0
    %549 = vmatprep.subr.bf16.mxu0 0
    %550 = vmatpush1.bf16.msra.mxu0 0
    %551 = vmatprep.subr.bf16.mxu0 0
    %552 = vmatpush1.bf16.msra.mxu0 0
    %553 = vmatprep.subr.bf16.mxu0 0
    %554 = vmatpush1.bf16.msra.mxu0 0
    %555 = vmatprep.subr.bf16.mxu0 0
    %556 = vmatpush1.bf16.msra.mxu0 0
    %557 = vmatprep.subr.bf16.mxu0 0
    %558 = vmatpush1.bf16.msra.mxu0 0
    %559 = vmatprep.subr.bf16.mxu0 0
    %560 = vmatpush1.bf16.msra.mxu0 0
    %561 = vmatprep.subr.bf16.mxu0 0
    %562 = vmatpush1.bf16.msra.mxu0 0
    %563 = vmatprep.subr.bf16.mxu0 0
    %564 = vmatpush1.bf16.msra.mxu0 0
    %565 = vmatprep.subr.bf16.mxu0 0
    %566 = vmatpush1.bf16.msra.mxu0 0
    %567 = vmatprep.subr.bf16.mxu0 0
    %568 = vmatpush1.bf16.msra.mxu0 0
    %569 = vmatprep.subr.bf16.mxu0 0
    %570 = vmatpush1.bf16.msra.mxu0 0
    %571 = vmatprep.mubr.bf16.mxu0 0
    %572 = vmatmul.mubr.bf16.gmra.mrb[0].mxu0 %v533
    %v573 = vpop.f32.mrb[0].mxu0
    %v574 = vadd.f32 0.0, %v573
    %v575 = vpop.f32.mrb[0].mxu0
    %v576 = vpop.f32.mrb[0].mxu0
    %v577 = vpop.f32.mrb[0].mxu0
    %578 = vdwg.mxu0
    %v580 = vsel %vm509, %v531, 0
    %v583 = vsel %vm535, %v415, 0
    %585 = vmatprep.subr.bf16.mxu0 0
    %586 = vmatpush1.bf16.msra.mxu0 %v583
    %587 = vmatprep.subr.bf16.mxu0 0
    %588 = vmatpush1.bf16.msra.mxu0 0
    %589 = vmatprep.subr.bf16.mxu0 0
    %590 = vmatpush1.bf16.msra.mxu0 0
    %591 = vmatprep.subr.bf16.mxu0 0
    %592 = vmatpush1.bf16.msra.mxu0 0
    %593 = vmatprep.subr.bf16.mxu0 0
    %594 = vmatpush1.bf16.msra.mxu0 0
    %595 = vmatprep.subr.bf16.mxu0 0
    %596 = vmatpush1.bf16.msra.mxu0 0
    %597 = vmatprep.subr.bf16.mxu0 0
    %598 = vmatpush1.bf16.msra.mxu0 0
    %599 = vmatprep.subr.bf16.mxu0 0
    %600 = vmatpush1.bf16.msra.mxu0 0
    %601 = vmatprep.subr.bf16.mxu0 0
    %602 = vmatpush1.bf16.msra.mxu0 0
    %603 = vmatprep.subr.bf16.mxu0 0
    %604 = vmatpush1.bf16.msra.mxu0 0
    %605 = vmatprep.subr.bf16.mxu0 0
    %606 = vmatpush1.bf16.msra.mxu0 0
    %607 = vmatprep.subr.bf16.mxu0 0
    %608 = vmatpush1.bf16.msra.mxu0 0
    %609 = vmatprep.subr.bf16.mxu0 0
    %610 = vmatpush1.bf16.msra.mxu0 0
    %611 = vmatprep.subr.bf16.mxu0 0
    %612 = vmatpush1.bf16.msra.mxu0 0
    %613 = vmatprep.subr.bf16.mxu0 0
    %614 = vmatpush1.bf16.msra.mxu0 0
    %615 = vmatprep.subr.bf16.mxu0 0
    %616 = vmatpush1.bf16.msra.mxu0 0
    %617 = vmatprep.mubr.bf16.mxu0 0
    %618 = vmatmul.mubr.bf16.gmra.mrb[0].mxu0 %v580
    %v619 = vpop.f32.mrb[0].mxu0
    %v620 = vadd.f32 0.0, %v619
    %v621 = vpop.f32.mrb[0].mxu0
    %v622 = vpop.f32.mrb[0].mxu0
    %v623 = vpop.f32.mrb[0].mxu0
    %624 = vdwg.mxu0
    %v625 = vmul.f32 %v574, %v528
    %v626 = vmul.f32 %v620, %v529
    %v627 = vpack.c.bf16 %v626, %v625
    %v628 = vld [vmem:[#allocation10] sm:$0xf]
    %v629 = vld [vmem:[#allocation10 + $0x4] sm:$0xf]
    %v630 = vld [vmem:[#allocation10 + $0x8] sm:$0xf]
    %v631 = vld [vmem:[#allocation10 + $0xc] sm:$0xf]
    %633 = vrot.lane.b32.xlu0 %v410, 96
    %v634 = vpop.permute.xlu0 %633
    %636 = vrot.lane.b32.xlu0 %v412, 96
    %v637 = vpop.permute.xlu0 %636
    %v639 = vsel %vm416, %v634, 0
    %v642 = vsel %vm416, %v637, 0
    %644 = vmatprep.subr.bf16.mxu0 0
    %645 = vmatpush1.bf16.xpose.msra.mxu0 %v642
    %646 = vmatprep.subr.bf16.mxu0 0
    %647 = vmatpush1.bf16.xpose.msra.mxu0 0
    %648 = vmatprep.subr.bf16.mxu0 0
    %649 = vmatpush1.bf16.xpose.msra.mxu0 0
    %650 = vmatprep.subr.bf16.mxu0 0
    %651 = vmatpush1.bf16.xpose.msra.mxu0 0
    %652 = vmatprep.subr.bf16.mxu0 0
    %653 = vmatpush1.bf16.xpose.msra.mxu0 0
    %654 = vmatprep.subr.bf16.mxu0 0
    %655 = vmatpush1.bf16.xpose.msra.mxu0 0
    %656 = vmatprep.subr.bf16.mxu0 0
    %657 = vmatpush1.bf16.xpose.msra.mxu0 0
    %658 = vmatprep.subr.bf16.mxu0 0
    %659 = vmatpush1.bf16.xpose.msra.mxu0 0
    %660 = vmatprep.subr.bf16.mxu0 0
    %661 = vmatpush1.bf16.xpose.msra.mxu0 0
    %662 = vmatprep.subr.bf16.mxu0 0
    %663 = vmatpush1.bf16.xpose.msra.mxu0 0
    %664 = vmatprep.subr.bf16.mxu0 0
    %665 = vmatpush1.bf16.xpose.msra.mxu0 0
    %666 = vmatprep.subr.bf16.mxu0 0
    %667 = vmatpush1.bf16.xpose.msra.mxu0 0
    %668 = vmatprep.subr.bf16.mxu0 0
    %669 = vmatpush1.bf16.xpose.msra.mxu0 0
    %670 = vmatprep.subr.bf16.mxu0 0
    %671 = vmatpush1.bf16.xpose.msra.mxu0 0
    %672 = vmatprep.subr.bf16.mxu0 0
    %673 = vmatpush1.bf16.xpose.msra.mxu0 0
    %674 = vmatprep.subr.bf16.mxu0 0
    %675 = vmatpush1.bf16.xpose.msra.mxu0 0
    %676 = vmatprep.mubr.bf16.mxu0 0
    %677 = vmatmul.mubr.bf16.gmra.mrb[0].mxu0 %v639
    %v678 = vpop.f32.mrb[0].mxu0
    %v679 = vadd.f32 0.0, %v678
    %v680 = vpop.f32.mrb[0].mxu0
    %v681 = vpop.f32.mrb[0].mxu0
    %v682 = vpop.f32.mrb[0].mxu0
    %683 = vdwg.mxu0
    %685 = vrot.lane.b32.xlu0 %v411, 96
    %v686 = vpop.permute.xlu0 %685
    %688 = vrot.lane.b32.xlu0 %v414, 96
    %v689 = vpop.permute.xlu0 %688
    %v691 = vsel %vm416, %v686, 0
    %v694 = vsel %vm416, %v689, 0
    %696 = vmatprep.subr.bf16.mxu0 0
    %697 = vmatpush1.bf16.xpose.msra.mxu0 %v694
    %698 = vmatprep.subr.bf16.mxu0 0
    %699 = vmatpush1.bf16.xpose.msra.mxu0 0
    %700 = vmatprep.subr.bf16.mxu0 0
    %701 = vmatpush1.bf16.xpose.msra.mxu0 0
    %702 = vmatprep.subr.bf16.mxu0 0
    %703 = vmatpush1.bf16.xpose.msra.mxu0 0
    %704 = vmatprep.subr.bf16.mxu0 0
    %705 = vmatpush1.bf16.xpose.msra.mxu0 0
    %706 = vmatprep.subr.bf16.mxu0 0
    %707 = vmatpush1.bf16.xpose.msra.mxu0 0
    %708 = vmatprep.subr.bf16.mxu0 0
    %709 = vmatpush1.bf16.xpose.msra.mxu0 0
    %710 = vmatprep.subr.bf16.mxu0 0
    %711 = vmatpush1.bf16.xpose.msra.mxu0 0
    %712 = vmatprep.subr.bf16.mxu0 0
    %713 = vmatpush1.bf16.xpose.msra.mxu0 0
    %714 = vmatprep.subr.bf16.mxu0 0
    %715 = vmatpush1.bf16.xpose.msra.mxu0 0
    %716 = vmatprep.subr.bf16.mxu0 0
    %717 = vmatpush1.bf16.xpose.msra.mxu0 0
    %718 = vmatprep.subr.bf16.mxu0 0
    %719 = vmatpush1.bf16.xpose.msra.mxu0 0
    %720 = vmatprep.subr.bf16.mxu0 0
    %721 = vmatpush1.bf16.xpose.msra.mxu0 0
    %722 = vmatprep.subr.bf16.mxu0 0
    %723 = vmatpush1.bf16.xpose.msra.mxu0 0
    %724 = vmatprep.subr.bf16.mxu0 0
    %725 = vmatpush1.bf16.xpose.msra.mxu0 0
    %726 = vmatprep.subr.bf16.mxu0 0
    %727 = vmatpush1.bf16.xpose.msra.mxu0 0
    %728 = vmatprep.mubr.bf16.mxu0 0
    %729 = vmatmul.mubr.bf16.gmra.mrb[0].mxu0 %v691
    %v730 = vpop.f32.mrb[0].mxu0
    %v731 = vadd.f32 0.0, %v730
    %v732 = vpop.f32.mrb[0].mxu0
    %v733 = vpop.f32.mrb[0].mxu0
    %v734 = vpop.f32.mrb[0].mxu0
    %735 = vdwg.mxu0
    %v736 = vsel %vm509, %v679, -inf
    %737 = vmax.xlane.f32.xlu0 %v736
    %v738 = vpop.xlane.xlu0 %737
    %v739 = vsel %vm509, %v731, -inf
    %740 = vmax.xlane.f32.xlu0 %v739
    %v741 = vpop.xlane.xlu0 %740
    %v742 = vsub.f32 %v679, %v738
    %v743 = vsub.f32 %v731, %v741
    %v744 = vmul.f32 %v742, 1.442695
    %v745 = vpow.pop %v744
    %v746 = vmul.f32 %v743, 1.442695
    %v747 = vpow.pop %v746
    %v748 = vsel %vm509, %v745, 0.0
    %749 = vadd.xlane.f32.xlu0 %v748
    %v750 = vpop.xlane.xlu0 %749
    %v751 = vsel %vm509, %v747, 0.0
    %752 = vadd.xlane.f32.xlu0 %v751
    %v753 = vpop.xlane.xlu0 %752
    %v754 = vrcp.pop %v750
    %v755 = vrcp.pop %v753
    %v756 = vpack.c.bf16 %v745, %v745
    %v757 = vpack.c.bf16 %v747, %v747
    %759 = vrot.lane.b32.xlu0 %v413, 96
    %v760 = vpop.permute.xlu0 %759
    %v762 = vsel %vm509, %v756, 0
    %v765 = vsel %vm535, %v760, 0
    %767 = vmatprep.subr.bf16.mxu0 0
    %768 = vmatpush1.bf16.msra.mxu0 %v765
    %769 = vmatprep.subr.bf16.mxu0 0
    %770 = vmatpush1.bf16.msra.mxu0 0
    %771 = vmatprep.subr.bf16.mxu0 0
    %772 = vmatpush1.bf16.msra.mxu0 0
    %773 = vmatprep.subr.bf16.mxu0 0
    %774 = vmatpush1.bf16.msra.mxu0 0
    %775 = vmatprep.subr.bf16.mxu0 0
    %776 = vmatpush1.bf16.msra.mxu0 0
    %777 = vmatprep.subr.bf16.mxu0 0
    %778 = vmatpush1.bf16.msra.mxu0 0
    %779 = vmatprep.subr.bf16.mxu0 0
    %780 = vmatpush1.bf16.msra.mxu0 0
    %781 = vmatprep.subr.bf16.mxu0 0
    %782 = vmatpush1.bf16.msra.mxu0 0
    %783 = vmatprep.subr.bf16.mxu0 0
    %784 = vmatpush1.bf16.msra.mxu0 0
    %785 = vmatprep.subr.bf16.mxu0 0
    %786 = vmatpush1.bf16.msra.mxu0 0
    %787 = vmatprep.subr.bf16.mxu0 0
    %788 = vmatpush1.bf16.msra.mxu0 0
    %789 = vmatprep.subr.bf16.mxu0 0
    %790 = vmatpush1.bf16.msra.mxu0 0
    %791 = vmatprep.subr.bf16.mxu0 0
    %792 = vmatpush1.bf16.msra.mxu0 0
    %793 = vmatprep.subr.bf16.mxu0 0
    %794 = vmatpush1.bf16.msra.mxu0 0
    %795 = vmatprep.subr.bf16.mxu0 0
    %796 = vmatpush1.bf16.msra.mxu0 0
    %797 = vmatprep.subr.bf16.mxu0 0
    %798 = vmatpush1.bf16.msra.mxu0 0
    %799 = vmatprep.mubr.bf16.mxu0 0
    %800 = vmatmul.mubr.bf16.gmra.mrb[0].mxu0 %v762
    %v801 = vpop.f32.mrb[0].mxu0
    %v802 = vadd.f32 0.0, %v801
    %v803 = vpop.f32.mrb[0].mxu0
    %v804 = vpop.f32.mrb[0].mxu0
    %v805 = vpop.f32.mrb[0].mxu0
    %806 = vdwg.mxu0
    %808 = vrot.lane.b32.xlu0 %v415, 96
    %v809 = vpop.permute.xlu0 %808
    %v811 = vsel %vm509, %v757, 0
    %v814 = vsel %vm535, %v809, 0
    %816 = vmatprep.subr.bf16.mxu0 0
    %817 = vmatpush1.bf16.msra.mxu0 %v814
    %818 = vmatprep.subr.bf16.mxu0 0
    %819 = vmatpush1.bf16.msra.mxu0 0
    %820 = vmatprep.subr.bf16.mxu0 0
    %821 = vmatpush1.bf16.msra.mxu0 0
    %822 = vmatprep.subr.bf16.mxu0 0
    %823 = vmatpush1.bf16.msra.mxu0 0
    %824 = vmatprep.subr.bf16.mxu0 0
    %825 = vmatpush1.bf16.msra.mxu0 0
    %826 = vmatprep.subr.bf16.mxu0 0
    %827 = vmatpush1.bf16.msra.mxu0 0
    %828 = vmatprep.subr.bf16.mxu0 0
    %829 = vmatpush1.bf16.msra.mxu0 0
    %830 = vmatprep.subr.bf16.mxu0 0
    %831 = vmatpush1.bf16.msra.mxu0 0
    %832 = vmatprep.subr.bf16.mxu0 0
    %833 = vmatpush1.bf16.msra.mxu0 0
    %834 = vmatprep.subr.bf16.mxu0 0
    %835 = vmatpush1.bf16.msra.mxu0 0
    %836 = vmatprep.subr.bf16.mxu0 0
    %837 = vmatpush1.bf16.msra.mxu0 0
    %838 = vmatprep.subr.bf16.mxu0 0
    %839 = vmatpush1.bf16.msra.mxu0 0
    %840 = vmatprep.subr.bf16.mxu0 0
    %841 = vmatpush1.bf16.msra.mxu0 0
    %842 = vmatprep.subr.bf16.mxu0 0
    %843 = vmatpush1.bf16.msra.mxu0 0
    %844 = vmatprep.subr.bf16.mxu0 0
    %845 = vmatpush1.bf16.msra.mxu0 0
    %846 = vmatprep.subr.bf16.mxu0 0
    %847 = vmatpush1.bf16.msra.mxu0 0
    %848 = vmatprep.mubr.bf16.mxu0 0
    %849 = vmatmul.mubr.bf16.gmra.mrb[0].mxu0 %v811
    %v850 = vpop.f32.mrb[0].mxu0
    %v851 = vadd.f32 0.0, %v850
    %v852 = vpop.f32.mrb[0].mxu0
    %v853 = vpop.f32.mrb[0].mxu0
    %v854 = vpop.f32.mrb[0].mxu0
    %855 = vdwg.mxu0
    %v856 = vmul.f32 %v802, %v754
    %v857 = vmul.f32 %v851, %v755
    %v858 = vpack.c.bf16 %v857, %v856
    %v859 = vld [vmem:[#allocation10 + $0x10] sm:$0xf]
    %v860 = vld [vmem:[#allocation10 + $0x14] sm:$0xf]
    %v861 = vld [vmem:[#allocation10 + $0x18] sm:$0xf]
    %v862 = vld [vmem:[#allocation10 + $0x1c] sm:$0xf]
    %v867 = vunpack.c.l.b16 %v859
    %v868 = vunpack.c.l.b16 %v860
    %v869 = vunpack.c.l.b16 %v861
    %v870 = vunpack.c.l.b16 %v862
    %v871 = vpack.c.b16 %v868, %v867
    %v872 = vpack.c.b16 %v870, %v869
    %v876 = vsel %vm416, %v858, 0
    %878 = vmatprep.subr.bf16.mxu0 0
    %879 = vmatpush1.bf16.msra.mxu0 %v871
    %880 = vmatprep.subr.bf16.mxu0 0
    %881 = vmatpush1.bf16.msra.mxu0 %v872
    %882 = vmatprep.subr.bf16.mxu0 0
    %883 = vmatpush1.bf16.msra.mxu0 0
    %884 = vmatprep.subr.bf16.mxu0 0
    %885 = vmatpush1.bf16.msra.mxu0 0
    %886 = vmatprep.subr.bf16.mxu0 0
    %887 = vmatpush1.bf16.msra.mxu0 0
    %888 = vmatprep.subr.bf16.mxu0 0
    %889 = vmatpush1.bf16.msra.mxu0 0
    %890 = vmatprep.subr.bf16.mxu0 0
    %891 = vmatpush1.bf16.msra.mxu0 0
    %892 = vmatprep.subr.bf16.mxu0 0
    %893 = vmatpush1.bf16.msra.mxu0 0
    %894 = vmatprep.subr.bf16.mxu0 0
    %895 = vmatpush1.bf16.msra.mxu0 0
    %896 = vmatprep.subr.bf16.mxu0 0
    %897 = vmatpush1.bf16.msra.mxu0 0
    %898 = vmatprep.subr.bf16.mxu0 0
    %899 = vmatpush1.bf16.msra.mxu0 0
    %900 = vmatprep.subr.bf16.mxu0 0
    %901 = vmatpush1.bf16.msra.mxu0 0
    %902 = vmatprep.subr.bf16.mxu0 0
    %903 = vmatpush1.bf16.msra.mxu0 0
    %904 = vmatprep.subr.bf16.mxu0 0
    %905 = vmatpush1.bf16.msra.mxu0 0
    %906 = vmatprep.subr.bf16.mxu0 0
    %907 = vmatpush1.bf16.msra.mxu0 0
    %908 = vmatprep.subr.bf16.mxu0 0
    %909 = vmatpush1.bf16.msra.mxu0 0
    %910 = vmatprep.mubr.bf16.mxu0 0
    %911 = vmatmul.mubr.bf16.gmra.mrb[0].mxu0 %v876
    %v912 = vpop.f32.mrb[0].mxu0
    %v913 = vadd.f32 0.0, %v912
    %v914 = vpop.f32.mrb[0].mxu0
    %v915 = vpop.f32.mrb[0].mxu0
    %v916 = vadd.f32 0.0, %v915
    %v917 = vpop.f32.mrb[0].mxu0
    %918 = vdwg.mxu0
    %v923 = vunpack.c.l.b16 %v628
    %v924 = vunpack.c.l.b16 %v629
    %v925 = vunpack.c.l.b16 %v630
    %v926 = vunpack.c.l.b16 %v631
    %v927 = vpack.c.b16 %v924, %v923
    %v928 = vpack.c.b16 %v926, %v925
    %v932 = vsel %vm416, %v627, 0
    %934 = vmatprep.subr.bf16.mxu0 0
    %935 = vmatpush1.bf16.msra.mxu0 %v927
    %936 = vmatprep.subr.bf16.mxu0 0
    %937 = vmatpush1.bf16.msra.mxu0 %v928
    %938 = vmatprep.subr.bf16.mxu0 0
    %939 = vmatpush1.bf16.msra.mxu0 0
    %940 = vmatprep.subr.bf16.mxu0 0
    %941 = vmatpush1.bf16.msra.mxu0 0
    %942 = vmatprep.subr.bf16.mxu0 0
    %943 = vmatpush1.bf16.msra.mxu0 0
    %944 = vmatprep.subr.bf16.mxu0 0
    %945 = vmatpush1.bf16.msra.mxu0 0
    %946 = vmatprep.subr.bf16.mxu0 0
    %947 = vmatpush1.bf16.msra.mxu0 0
    %948 = vmatprep.subr.bf16.mxu0 0
    %949 = vmatpush1.bf16.msra.mxu0 0
    %950 = vmatprep.subr.bf16.mxu0 0
    %951 = vmatpush1.bf16.msra.mxu0 0
    %952 = vmatprep.subr.bf16.mxu0 0
    %953 = vmatpush1.bf16.msra.mxu0 0
    %954 = vmatprep.subr.bf16.mxu0 0
    %955 = vmatpush1.bf16.msra.mxu0 0
    %956 = vmatprep.subr.bf16.mxu0 0
    %957 = vmatpush1.bf16.msra.mxu0 0
    %958 = vmatprep.subr.bf16.mxu0 0
    %959 = vmatpush1.bf16.msra.mxu0 0
    %960 = vmatprep.subr.bf16.mxu0 0
    %961 = vmatpush1.bf16.msra.mxu0 0
    %962 = vmatprep.subr.bf16.mxu0 0
    %963 = vmatpush1.bf16.msra.mxu0 0
    %964 = vmatprep.subr.bf16.mxu0 0
    %965 = vmatpush1.bf16.msra.mxu0 0
    %966 = vmatprep.mubr.bf16.mxu0 0
    %967 = vmatmul.mubr.bf16.gmra.mrb[0].mxu0 %v932
    %v968 = vpop.f32.mrb[0].mxu0
    %v969 = vadd.f32 %v913, %v968
    %v970 = vpop.f32.mrb[0].mxu0
    %v971 = vpop.f32.mrb[0].mxu0
    %v972 = vadd.f32 %v916, %v971
    %v973 = vpop.f32.mrb[0].mxu0
    %974 = vdwg.mxu0
    %975 = vrot.lane.b32.xlu0 %v410, 64
    %v976 = vpop.permute.xlu0 %975
    %977 = vrot.lane.b32.xlu0 %v412, 64
    %v978 = vpop.permute.xlu0 %977
    %v980 = vsel %vm416, %v976, 0
    %v983 = vsel %vm416, %v978, 0
    %985 = vmatprep.subr.bf16.mxu0 0
    %986 = vmatpush1.bf16.xpose.msra.mxu0 %v983
    %987 = vmatprep.subr.bf16.mxu0 0
    %988 = vmatpush1.bf16.xpose.msra.mxu0 0
    %989 = vmatprep.subr.bf16.mxu0 0
    %990 = vmatpush1.bf16.xpose.msra.mxu0 0
    %991 = vmatprep.subr.bf16.mxu0 0
    %992 = vmatpush1.bf16.xpose.msra.mxu0 0
    %993 = vmatprep.subr.bf16.mxu0 0
    %994 = vmatpush1.bf16.xpose.msra.mxu0 0
    %995 = vmatprep.subr.bf16.mxu0 0
    %996 = vmatpush1.bf16.xpose.msra.mxu0 0
    %997 = vmatprep.subr.bf16.mxu0 0
    %998 = vmatpush1.bf16.xpose.msra.mxu0 0
    %999 = vmatprep.subr.bf16.mxu0 0
    %1000 = vmatpush1.bf16.xpose.msra.mxu0 0
    %1001 = vmatprep.subr.bf16.mxu0 0
    %1002 = vmatpush1.bf16.xpose.msra.mxu0 0
    %1003 = vmatprep.subr.bf16.mxu0 0
    %1004 = vmatpush1.bf16.xpose.msra.mxu0 0
    %1005 = vmatprep.subr.bf16.mxu0 0
    %1006 = vmatpush1.bf16.xpose.msra.mxu0 0
    %1007 = vmatprep.subr.bf16.mxu0 0
    %1008 = vmatpush1.bf16.xpose.msra.mxu0 0
    %1009 = vmatprep.subr.bf16.mxu0 0
    %1010 = vmatpush1.bf16.xpose.msra.mxu0 0
    %1011 = vmatprep.subr.bf16.mxu0 0
    %1012 = vmatpush1.bf16.xpose.msra.mxu0 0
    %1013 = vmatprep.subr.bf16.mxu0 0
    %1014 = vmatpush1.bf16.xpose.msra.mxu0 0
    %1015 = vmatprep.subr.bf16.mxu0 0
    %1016 = vmatpush1.bf16.xpose.msra.mxu0 0
    %1017 = vmatprep.mubr.bf16.mxu0 0
    %1018 = vmatmul.mubr.bf16.gmra.mrb[0].mxu0 %v980
    %v1019 = vpop.f32.mrb[0].mxu0
    %v1020 = vadd.f32 0.0, %v1019
    %v1021 = vpop.f32.mrb[0].mxu0
    %v1022 = vpop.f32.mrb[0].mxu0
    %v1023 = vpop.f32.mrb[0].mxu0
    %1024 = vdwg.mxu0
    %1025 = vrot.lane.b32.xlu0 %v411, 64
    %v1026 = vpop.permute.xlu0 %1025
    %1027 = vrot.lane.b32.xlu0 %v414, 64
    %v1028 = vpop.permute.xlu0 %1027
    %v1030 = vsel %vm416, %v1026, 0
    %v1033 = vsel %vm416, %v1028, 0
    %1035 = vmatprep.subr.bf16.mxu0 0
    %1036 = vmatpush1.bf16.xpose.msra.mxu0 %v1033
    %1037 = vmatprep.subr.bf16.mxu0 0
    %1038 = vmatpush1.bf16.xpose.msra.mxu0 0
    %1039 = vmatprep.subr.bf16.mxu0 0
    %1040 = vmatpush1.bf16.xpose.msra.mxu0 0
    %1041 = vmatprep.subr.bf16.mxu0 0
    %1042 = vmatpush1.bf16.xpose.msra.mxu0 0
    %1043 = vmatprep.subr.bf16.mxu0 0
    %1044 = vmatpush1.bf16.xpose.msra.mxu0 0
    %1045 = vmatprep.subr.bf16.mxu0 0
    %1046 = vmatpush1.bf16.xpose.msra.mxu0 0
    %1047 = vmatprep.subr.bf16.mxu0 0
    %1048 = vmatpush1.bf16.xpose.msra.mxu0 0
    %1049 = vmatprep.subr.bf16.mxu0 0
    %1050 = vmatpush1.bf16.xpose.msra.mxu0 0
    %1051 = vmatprep.subr.bf16.mxu0 0
    %1052 = vmatpush1.bf16.xpose.msra.mxu0 0
    %1053 = vmatprep.subr.bf16.mxu0 0
    %1054 = vmatpush1.bf16.xpose.msra.mxu0 0
    %1055 = vmatprep.subr.bf16.mxu0 0
    %1056 = vmatpush1.bf16.xpose.msra.mxu0 0
    %1057 = vmatprep.subr.bf16.mxu0 0
    %1058 = vmatpush1.bf16.xpose.msra.mxu0 0
    %1059 = vmatprep.subr.bf16.mxu0 0
    %1060 = vmatpush1.bf16.xpose.msra.mxu0 0
    %1061 = vmatprep.subr.bf16.mxu0 0
    %1062 = vmatpush1.bf16.xpose.msra.mxu0 0
    %1063 = vmatprep.subr.bf16.mxu0 0
    %1064 = vmatpush1.bf16.xpose.msra.mxu0 0
    %1065 = vmatprep.subr.bf16.mxu0 0
    %1066 = vmatpush1.bf16.xpose.msra.mxu0 0
    %1067 = vmatprep.mubr.bf16.mxu0 0
    %1068 = vmatmul.mubr.bf16.gmra.mrb[0].mxu0 %v1030
    %v1069 = vpop.f32.mrb[0].mxu0
    %v1070 = vadd.f32 0.0, %v1069
    %v1071 = vpop.f32.mrb[0].mxu0
    %v1072 = vpop.f32.mrb[0].mxu0
    %v1073 = vpop.f32.mrb[0].mxu0
    %1074 = vdwg.mxu0
    %v1075 = vsel %vm509, %v1020, -inf
    %1076 = vmax.xlane.f32.xlu0 %v1075
    %v1077 = vpop.xlane.xlu0 %1076
    %v1078 = vsel %vm509, %v1070, -inf
    %1079 = vmax.xlane.f32.xlu0 %v1078
    %v1080 = vpop.xlane.xlu0 %1079
    %v1081 = vsub.f32 %v1020, %v1077
    %v1082 = vsub.f32 %v1070, %v1080
    %v1083 = vmul.f32 %v1081, 1.442695
    %v1084 = vpow.pop %v1083
    %v1085 = vmul.f32 %v1082, 1.442695
    %v1086 = vpow.pop %v1085
    %v1087 = vsel %vm509, %v1084, 0.0
    %1088 = vadd.xlane.f32.xlu0 %v1087
    %v1089 = vpop.xlane.xlu0 %1088
    %v1090 = vsel %vm509, %v1086, 0.0
    %1091 = vadd.xlane.f32.xlu0 %v1090
    %v1092 = vpop.xlane.xlu0 %1091
    %v1093 = vrcp.pop %v1089
    %v1094 = vrcp.pop %v1092
    %v1095 = vpack.c.bf16 %v1084, %v1084
    %v1096 = vpack.c.bf16 %v1086, %v1086
    %1097 = vrot.lane.b32.xlu0 %v413, 64
    %v1098 = vpop.permute.xlu0 %1097
    %v1100 = vsel %vm509, %v1095, 0
    %v1103 = vsel %vm535, %v1098, 0
    %1105 = vmatprep.subr.bf16.mxu0 0
    %1106 = vmatpush1.bf16.msra.mxu0 %v1103
    %1107 = vmatprep.subr.bf16.mxu0 0
    %1108 = vmatpush1.bf16.msra.mxu0 0
    %1109 = vmatprep.subr.bf16.mxu0 0
    %1110 = vmatpush1.bf16.msra.mxu0 0
    %1111 = vmatprep.subr.bf16.mxu0 0
    %1112 = vmatpush1.bf16.msra.mxu0 0
    %1113 = vmatprep.subr.bf16.mxu0 0
    %1114 = vmatpush1.bf16.msra.mxu0 0
    %1115 = vmatprep.subr.bf16.mxu0 0
    %1116 = vmatpush1.bf16.msra.mxu0 0
    %1117 = vmatprep.subr.bf16.mxu0 0
    %1118 = vmatpush1.bf16.msra.mxu0 0
    %1119 = vmatprep.subr.bf16.mxu0 0
    %1120 = vmatpush1.bf16.msra.mxu0 0
    %1121 = vmatprep.subr.bf16.mxu0 0
    %1122 = vmatpush1.bf16.msra.mxu0 0
    %1123 = vmatprep.subr.bf16.mxu0 0
    %1124 = vmatpush1.bf16.msra.mxu0 0
    %1125 = vmatprep.subr.bf16.mxu0 0
    %1126 = vmatpush1.bf16.msra.mxu0 0
    %1127 = vmatprep.subr.bf16.mxu0 0
    %1128 = vmatpush1.bf16.msra.mxu0 0
    %1129 = vmatprep.subr.bf16.mxu0 0
    %1130 = vmatpush1.bf16.msra.mxu0 0
    %1131 = vmatprep.subr.bf16.mxu0 0
    %1132 = vmatpush1.bf16.msra.mxu0 0
    %1133 = vmatprep.subr.bf16.mxu0 0
    %1134 = vmatpush1.bf16.msra.mxu0 0
    %1135 = vmatprep.subr.bf16.mxu0 0
    %1136 = vmatpush1.bf16.msra.mxu0 0
    %1137 = vmatprep.mubr.bf16.mxu0 0
    %1138 = vmatmul.mubr.bf16.gmra.mrb[0].mxu0 %v1100
    %v1139 = vpop.f32.mrb[0].mxu0
    %v1140 = vadd.f32 0.0, %v1139
    %v1141 = vpop.f32.mrb[0].mxu0
    %v1142 = vpop.f32.mrb[0].mxu0
    %v1143 = vpop.f32.mrb[0].mxu0
    %1144 = vdwg.mxu0
    %1145 = vrot.lane.b32.xlu0 %v415, 64
    %v1146 = vpop.permute.xlu0 %1145
    %v1148 = vsel %vm509, %v1096, 0
    %v1151 = vsel %vm535, %v1146, 0
    %1153 = vmatprep.subr.bf16.mxu0 0
    %1154 = vmatpush1.bf16.msra.mxu0 %v1151
    %1155 = vmatprep.subr.bf16.mxu0 0
    %1156 = vmatpush1.bf16.msra.mxu0 0
    %1157 = vmatprep.subr.bf16.mxu0 0
    %1158 = vmatpush1.bf16.msra.mxu0 0
    %1159 = vmatprep.subr.bf16.mxu0 0
    %1160 = vmatpush1.bf16.msra.mxu0 0
    %1161 = vmatprep.subr.bf16.mxu0 0
    %1162 = vmatpush1.bf16.msra.mxu0 0
    %1163 = vmatprep.subr.bf16.mxu0 0
    %1164 = vmatpush1.bf16.msra.mxu0 0
    %1165 = vmatprep.subr.bf16.mxu0 0
    %1166 = vmatpush1.bf16.msra.mxu0 0
    %1167 = vmatprep.subr.bf16.mxu0 0
    %1168 = vmatpush1.bf16.msra.mxu0 0
    %1169 = vmatprep.subr.bf16.mxu0 0
    %1170 = vmatpush1.bf16.msra.mxu0 0
    %1171 = vmatprep.subr.bf16.mxu0 0
    %1172 = vmatpush1.bf16.msra.mxu0 0
    %1173 = vmatprep.subr.bf16.mxu0 0
    %1174 = vmatpush1.bf16.msra.mxu0 0
    %1175 = vmatprep.subr.bf16.mxu0 0
    %1176 = vmatpush1.bf16.msra.mxu0 0
    %1177 = vmatprep.subr.bf16.mxu0 0
    %1178 = vmatpush1.bf16.msra.mxu0 0
    %1179 = vmatprep.subr.bf16.mxu0 0
    %1180 = vmatpush1.bf16.msra.mxu0 0
    %1181 = vmatprep.subr.bf16.mxu0 0
    %1182 = vmatpush1.bf16.msra.mxu0 0
    %1183 = vmatprep.subr.bf16.mxu0 0
    %1184 = vmatpush1.bf16.msra.mxu0 0
    %1185 = vmatprep.mubr.bf16.mxu0 0
    %1186 = vmatmul.mubr.bf16.gmra.mrb[0].mxu0 %v1148
    %v1187 = vpop.f32.mrb[0].mxu0
    %v1188 = vadd.f32 0.0, %v1187
    %v1189 = vpop.f32.mrb[0].mxu0
    %v1190 = vpop.f32.mrb[0].mxu0
    %v1191 = vpop.f32.mrb[0].mxu0
    %1192 = vdwg.mxu0
    %v1193 = vmul.f32 %v1140, %v1093
    %v1194 = vmul.f32 %v1188, %v1094
    %v1195 = vpack.c.bf16 %v1194, %v1193
    %v1196 = vld [vmem:[#allocation10 + $0x20] sm:$0xf]
    %v1197 = vld [vmem:[#allocation10 + $0x24] sm:$0xf]
    %v1198 = vld [vmem:[#allocation10 + $0x28] sm:$0xf]
    %v1199 = vld [vmem:[#allocation10 + $0x2c] sm:$0xf]
    %v1204 = vunpack.c.l.b16 %v1196
    %v1205 = vunpack.c.l.b16 %v1197
    %v1206 = vunpack.c.l.b16 %v1198
    %v1207 = vunpack.c.l.b16 %v1199
    %v1208 = vpack.c.b16 %v1205, %v1204
    %v1209 = vpack.c.b16 %v1207, %v1206
    %v1213 = vsel %vm416, %v1195, 0
    %1215 = vmatprep.subr.bf16.mxu0 0
    %1216 = vmatpush1.bf16.msra.mxu0 %v1208
    %1217 = vmatprep.subr.bf16.mxu0 0
    %1218 = vmatpush1.bf16.msra.mxu0 %v1209
    %1219 = vmatprep.subr.bf16.mxu0 0
    %1220 = vmatpush1.bf16.msra.mxu0 0
    %1221 = vmatprep.subr.bf16.mxu0 0
    %1222 = vmatpush1.bf16.msra.mxu0 0
    %1223 = vmatprep.subr.bf16.mxu0 0
    %1224 = vmatpush1.bf16.msra.mxu0 0
    %1225 = vmatprep.subr.bf16.mxu0 0
    %1226 = vmatpush1.bf16.msra.mxu0 0
    %1227 = vmatprep.subr.bf16.mxu0 0
    %1228 = vmatpush1.bf16.msra.mxu0 0
    %1229 = vmatprep.subr.bf16.mxu0 0
    %1230 = vmatpush1.bf16.msra.mxu0 0
    %1231 = vmatprep.subr.bf16.mxu0 0
    %1232 = vmatpush1.bf16.msra.mxu0 0
    %1233 = vmatprep.subr.bf16.mxu0 0
    %1234 = vmatpush1.bf16.msra.mxu0 0
    %1235 = vmatprep.subr.bf16.mxu0 0
    %1236 = vmatpush1.bf16.msra.mxu0 0
    %1237 = vmatprep.subr.bf16.mxu0 0
    %1238 = vmatpush1.bf16.msra.mxu0 0
    %1239 = vmatprep.subr.bf16.mxu0 0
    %1240 = vmatpush1.bf16.msra.mxu0 0
    %1241 = vmatprep.subr.bf16.mxu0 0
    %1242 = vmatpush1.bf16.msra.mxu0 0
    %1243 = vmatprep.subr.bf16.mxu0 0
    %1244 = vmatpush1.bf16.msra.mxu0 0
    %1245 = vmatprep.subr.bf16.mxu0 0
    %1246 = vmatpush1.bf16.msra.mxu0 0
    %1247 = vmatprep.mubr.bf16.mxu0 0
    %1248 = vmatmul.mubr.bf16.gmra.mrb[0].mxu0 %v1213
    %v1249 = vpop.f32.mrb[0].mxu0
    %v1250 = vadd.f32 0.0, %v1249
    %v1251 = vpop.f32.mrb[0].mxu0
    %v1252 = vpop.f32.mrb[0].mxu0
    %v1253 = vadd.f32 0.0, %v1252
    %v1254 = vpop.f32.mrb[0].mxu0
    %1255 = vdwg.mxu0
    %v1256 = vadd.f32 %v969, %v1250
    %v1257 = vadd.f32 %v972, %v1253
    %1258 = vrot.lane.b32.xlu0 %v410, 32
    %v1259 = vpop.permute.xlu0 %1258
    %1260 = vrot.lane.b32.xlu0 %v412, 32
    %v1261 = vpop.permute.xlu0 %1260
    %v1263 = vsel %vm416, %v1259, 0
    %v1266 = vsel %vm416, %v1261, 0
    %1268 = vmatprep.subr.bf16.mxu0 0
    %1269 = vmatpush1.bf16.xpose.msra.mxu0 %v1266
    %1270 = vmatprep.subr.bf16.mxu0 0
    %1271 = vmatpush1.bf16.xpose.msra.mxu0 0
    %1272 = vmatprep.subr.bf16.mxu0 0
    %1273 = vmatpush1.bf16.xpose.msra.mxu0 0
    %1274 = vmatprep.subr.bf16.mxu0 0
    %1275 = vmatpush1.bf16.xpose.msra.mxu0 0
    %1276 = vmatprep.subr.bf16.mxu0 0
    %1277 = vmatpush1.bf16.xpose.msra.mxu0 0
    %1278 = vmatprep.subr.bf16.mxu0 0
    %1279 = vmatpush1.bf16.xpose.msra.mxu0 0
    %1280 = vmatprep.subr.bf16.mxu0 0
    %1281 = vmatpush1.bf16.xpose.msra.mxu0 0
    %1282 = vmatprep.subr.bf16.mxu0 0
    %1283 = vmatpush1.bf16.xpose.msra.mxu0 0
    %1284 = vmatprep.subr.bf16.mxu0 0
    %1285 = vmatpush1.bf16.xpose.msra.mxu0 0
    %1286 = vmatprep.subr.bf16.mxu0 0
    %1287 = vmatpush1.bf16.xpose.msra.mxu0 0
    %1288 = vmatprep.subr.bf16.mxu0 0
    %1289 = vmatpush1.bf16.xpose.msra.mxu0 0
    %1290 = vmatprep.subr.bf16.mxu0 0
    %1291 = vmatpush1.bf16.xpose.msra.mxu0 0
    %1292 = vmatprep.subr.bf16.mxu0 0
    %1293 = vmatpush1.bf16.xpose.msra.mxu0 0
    %1294 = vmatprep.subr.bf16.mxu0 0
    %1295 = vmatpush1.bf16.xpose.msra.mxu0 0
    %1296 = vmatprep.subr.bf16.mxu0 0
    %1297 = vmatpush1.bf16.xpose.msra.mxu0 0
    %1298 = vmatprep.subr.bf16.mxu0 0
    %1299 = vmatpush1.bf16.xpose.msra.mxu0 0
    %1300 = vmatprep.mubr.bf16.mxu0 0
    %1301 = vmatmul.mubr.bf16.gmra.mrb[0].mxu0 %v1263
    %v1302 = vpop.f32.mrb[0].mxu0
    %v1303 = vadd.f32 0.0, %v1302
    %v1304 = vpop.f32.mrb[0].mxu0
    %v1305 = vpop.f32.mrb[0].mxu0
    %v1306 = vpop.f32.mrb[0].mxu0
    %1307 = vdwg.mxu0
    %1308 = vrot.lane.b32.xlu0 %v411, 32
    %v1309 = vpop.permute.xlu0 %1308
    %1310 = vrot.lane.b32.xlu0 %v414, 32
    %v1311 = vpop.permute.xlu0 %1310
    %v1313 = vsel %vm416, %v1309, 0
    %v1316 = vsel %vm416, %v1311, 0
    %1318 = vmatprep.subr.bf16.mxu0 0
    %1319 = vmatpush1.bf16.xpose.msra.mxu0 %v1316
    %1320 = vmatprep.subr.bf16.mxu0 0
    %1321 = vmatpush1.bf16.xpose.msra.mxu0 0
    %1322 = vmatprep.subr.bf16.mxu0 0
    %1323 = vmatpush1.bf16.xpose.msra.mxu0 0
    %1324 = vmatprep.subr.bf16.mxu0 0
    %1325 = vmatpush1.bf16.xpose.msra.mxu0 0
    %1326 = vmatprep.subr.bf16.mxu0 0
    %1327 = vmatpush1.bf16.xpose.msra.mxu0 0
    %1328 = vmatprep.subr.bf16.mxu0 0
    %1329 = vmatpush1.bf16.xpose.msra.mxu0 0
    %1330 = vmatprep.subr.bf16.mxu0 0
    %1331 = vmatpush1.bf16.xpose.msra.mxu0 0
    %1332 = vmatprep.subr.bf16.mxu0 0
    %1333 = vmatpush1.bf16.xpose.msra.mxu0 0
    %1334 = vmatprep.subr.bf16.mxu0 0
    %1335 = vmatpush1.bf16.xpose.msra.mxu0 0
    %1336 = vmatprep.subr.bf16.mxu0 0
    %1337 = vmatpush1.bf16.xpose.msra.mxu0 0
    %1338 = vmatprep.subr.bf16.mxu0 0
    %1339 = vmatpush1.bf16.xpose.msra.mxu0 0
    %1340 = vmatprep.subr.bf16.mxu0 0
    %1341 = vmatpush1.bf16.xpose.msra.mxu0 0
    %1342 = vmatprep.subr.bf16.mxu0 0
    %1343 = vmatpush1.bf16.xpose.msra.mxu0 0
    %1344 = vmatprep.subr.bf16.mxu0 0
    %1345 = vmatpush1.bf16.xpose.msra.mxu0 0
    %1346 = vmatprep.subr.bf16.mxu0 0
    %1347 = vmatpush1.bf16.xpose.msra.mxu0 0
    %1348 = vmatprep.subr.bf16.mxu0 0
    %1349 = vmatpush1.bf16.xpose.msra.mxu0 0
    %1350 = vmatprep.mubr.bf16.mxu0 0
    %1351 = vmatmul.mubr.bf16.gmra.mrb[0].mxu0 %v1313
    %v1352 = vpop.f32.mrb[0].mxu0
    %v1353 = vadd.f32 0.0, %v1352
    %v1354 = vpop.f32.mrb[0].mxu0
    %v1355 = vpop.f32.mrb[0].mxu0
    %v1356 = vpop.f32.mrb[0].mxu0
    %1357 = vdwg.mxu0
    %v1358 = vsel %vm509, %v1303, -inf
    %1359 = vmax.xlane.f32.xlu0 %v1358
    %v1360 = vpop.xlane.xlu0 %1359
    %v1361 = vsel %vm509, %v1353, -inf
    %1362 = vmax.xlane.f32.xlu0 %v1361
    %v1363 = vpop.xlane.xlu0 %1362
    %v1364 = vsub.f32 %v1303, %v1360
    %v1365 = vsub.f32 %v1353, %v1363
    %v1366 = vmul.f32 %v1364, 1.442695
    %v1367 = vpow.pop %v1366
    %v1368 = vmul.f32 %v1365, 1.442695
    %v1369 = vpow.pop %v1368
    %v1370 = vsel %vm509, %v1367, 0.0
    %1371 = vadd.xlane.f32.xlu0 %v1370
    %v1372 = vpop.xlane.xlu0 %1371
    %v1373 = vsel %vm509, %v1369, 0.0
    %1374 = vadd.xlane.f32.xlu0 %v1373
    %v1375 = vpop.xlane.xlu0 %1374
    %v1376 = vrcp.pop %v1372
    %v1377 = vrcp.pop %v1375
    %v1378 = vpack.c.bf16 %v1367, %v1367
    %v1379 = vpack.c.bf16 %v1369, %v1369
    %1380 = vrot.lane.b32.xlu0 %v413, 32
    %v1381 = vpop.permute.xlu0 %1380
    %v1383 = vsel %vm509, %v1378, 0
    %v1386 = vsel %vm535, %v1381, 0
    %1388 = vmatprep.subr.bf16.mxu0 0
    %1389 = vmatpush1.bf16.msra.mxu0 %v1386
    %1390 = vmatprep.subr.bf16.mxu0 0
    %1391 = vmatpush1.bf16.msra.mxu0 0
    %1392 = vmatprep.subr.bf16.mxu0 0
    %1393 = vmatpush1.bf16.msra.mxu0 0
    %1394 = vmatprep.subr.bf16.mxu0 0
    %1395 = vmatpush1.bf16.msra.mxu0 0
    %1396 = vmatprep.subr.bf16.mxu0 0
    %1397 = vmatpush1.bf16.msra.mxu0 0
    %1398 = vmatprep.subr.bf16.mxu0 0
    %1399 = vmatpush1.bf16.msra.mxu0 0
    %1400 = vmatprep.subr.bf16.mxu0 0
    %1401 = vmatpush1.bf16.msra.mxu0 0
    %1402 = vmatprep.subr.bf16.mxu0 0
    %1403 = vmatpush1.bf16.msra.mxu0 0
    %1404 = vmatprep.subr.bf16.mxu0 0
    %1405 = vmatpush1.bf16.msra.mxu0 0
    %1406 = vmatprep.subr.bf16.mxu0 0
    %1407 = vmatpush1.bf16.msra.mxu0 0
    %1408 = vmatprep.subr.bf16.mxu0 0
    %1409 = vmatpush1.bf16.msra.mxu0 0
    %1410 = vmatprep.subr.bf16.mxu0 0
    %1411 = vmatpush1.bf16.msra.mxu0 0
    %1412 = vmatprep.subr.bf16.mxu0 0
    %1413 = vmatpush1.bf16.msra.mxu0 0
    %1414 = vmatprep.subr.bf16.mxu0 0
    %1415 = vmatpush1.bf16.msra.mxu0 0
    %1416 = vmatprep.subr.bf16.mxu0 0
    %1417 = vmatpush1.bf16.msra.mxu0 0
    %1418 = vmatprep.subr.bf16.mxu0 0
    %1419 = vmatpush1.bf16.msra.mxu0 0
    %1420 = vmatprep.mubr.bf16.mxu0 0
    %1421 = vmatmul.mubr.bf16.gmra.mrb[0].mxu0 %v1383
    %v1422 = vpop.f32.mrb[0].mxu0
    %v1423 = vadd.f32 0.0, %v1422
    %v1424 = vpop.f32.mrb[0].mxu0
    %v1425 = vpop.f32.mrb[0].mxu0
    %v1426 = vpop.f32.mrb[0].mxu0
    %1427 = vdwg.mxu0
    %1428 = vrot.lane.b32.xlu0 %v415, 32
    %v1429 = vpop.permute.xlu0 %1428
    %v1431 = vsel %vm509, %v1379, 0
    %v1434 = vsel %vm535, %v1429, 0
    %1436 = vmatprep.subr.bf16.mxu0 0
    %1437 = vmatpush1.bf16.msra.mxu0 %v1434
    %1438 = vmatprep.subr.bf16.mxu0 0
    %1439 = vmatpush1.bf16.msra.mxu0 0
    %1440 = vmatprep.subr.bf16.mxu0 0
    %1441 = vmatpush1.bf16.msra.mxu0 0
    %1442 = vmatprep.subr.bf16.mxu0 0
    %1443 = vmatpush1.bf16.msra.mxu0 0
    %1444 = vmatprep.subr.bf16.mxu0 0
    %1445 = vmatpush1.bf16.msra.mxu0 0
    %1446 = vmatprep.subr.bf16.mxu0 0
    %1447 = vmatpush1.bf16.msra.mxu0 0
    %1448 = vmatprep.subr.bf16.mxu0 0
    %1449 = vmatpush1.bf16.msra.mxu0 0
    %1450 = vmatprep.subr.bf16.mxu0 0
    %1451 = vmatpush1.bf16.msra.mxu0 0
    %1452 = vmatprep.subr.bf16.mxu0 0
    %1453 = vmatpush1.bf16.msra.mxu0 0
    %1454 = vmatprep.subr.bf16.mxu0 0
    %1455 = vmatpush1.bf16.msra.mxu0 0
    %1456 = vmatprep.subr.bf16.mxu0 0
    %1457 = vmatpush1.bf16.msra.mxu0 0
    %1458 = vmatprep.subr.bf16.mxu0 0
    %1459 = vmatpush1.bf16.msra.mxu0 0
    %1460 = vmatprep.subr.bf16.mxu0 0
    %1461 = vmatpush1.bf16.msra.mxu0 0
    %1462 = vmatprep.subr.bf16.mxu0 0
    %1463 = vmatpush1.bf16.msra.mxu0 0
    %1464 = vmatprep.subr.bf16.mxu0 0
    %1465 = vmatpush1.bf16.msra.mxu0 0
    %1466 = vmatprep.subr.bf16.mxu0 0
    %1467 = vmatpush1.bf16.msra.mxu0 0
    %1468 = vmatprep.mubr.bf16.mxu0 0
    %1469 = vmatmul.mubr.bf16.gmra.mrb[0].mxu0 %v1431
    %v1470 = vpop.f32.mrb[0].mxu0
    %v1471 = vadd.f32 0.0, %v1470
    %v1472 = vpop.f32.mrb[0].mxu0
    %v1473 = vpop.f32.mrb[0].mxu0
    %v1474 = vpop.f32.mrb[0].mxu0
    %1475 = vdwg.mxu0
    %v1476 = vmul.f32 %v1423, %v1376
    %v1477 = vmul.f32 %v1471, %v1377
    %v1478 = vpack.c.bf16 %v1477, %v1476
    %v1479 = vld [vmem:[#allocation10 + $0x30] sm:$0xf]
    %v1480 = vld [vmem:[#allocation10 + $0x34] sm:$0xf]
    %v1481 = vld [vmem:[#allocation10 + $0x38] sm:$0xf]
    %v1482 = vld [vmem:[#allocation10 + $0x3c] sm:$0xf]
    %v1487 = vunpack.c.l.b16 %v1479
    %v1488 = vunpack.c.l.b16 %v1480
    %v1489 = vunpack.c.l.b16 %v1481
    %v1490 = vunpack.c.l.b16 %v1482
    %v1491 = vpack.c.b16 %v1488, %v1487
    %v1492 = vpack.c.b16 %v1490, %v1489
    %v1496 = vsel %vm416, %v1478, 0
    %1498 = vmatprep.subr.bf16.mxu0 0
    %1499 = vmatpush1.bf16.msra.mxu0 %v1491
    %1500 = vmatprep.subr.bf16.mxu0 0
    %1501 = vmatpush1.bf16.msra.mxu0 %v1492
    %1502 = vmatprep.subr.bf16.mxu0 0
    %1503 = vmatpush1.bf16.msra.mxu0 0
    %1504 = vmatprep.subr.bf16.mxu0 0
    %1505 = vmatpush1.bf16.msra.mxu0 0
    %1506 = vmatprep.subr.bf16.mxu0 0
    %1507 = vmatpush1.bf16.msra.mxu0 0
    %1508 = vmatprep.subr.bf16.mxu0 0
    %1509 = vmatpush1.bf16.msra.mxu0 0
    %1510 = vmatprep.subr.bf16.mxu0 0
    %1511 = vmatpush1.bf16.msra.mxu0 0
    %1512 = vmatprep.subr.bf16.mxu0 0
    %1513 = vmatpush1.bf16.msra.mxu0 0
    %1514 = vmatprep.subr.bf16.mxu0 0
    %1515 = vmatpush1.bf16.msra.mxu0 0
    %1516 = vmatprep.subr.bf16.mxu0 0
    %1517 = vmatpush1.bf16.msra.mxu0 0
    %1518 = vmatprep.subr.bf16.mxu0 0
    %1519 = vmatpush1.bf16.msra.mxu0 0
    %1520 = vmatprep.subr.bf16.mxu0 0
    %1521 = vmatpush1.bf16.msra.mxu0 0
    %1522 = vmatprep.subr.bf16.mxu0 0
    %1523 = vmatpush1.bf16.msra.mxu0 0
    %1524 = vmatprep.subr.bf16.mxu0 0
    %1525 = vmatpush1.bf16.msra.mxu0 0
    %1526 = vmatprep.subr.bf16.mxu0 0
    %1527 = vmatpush1.bf16.msra.mxu0 0
    %1528 = vmatprep.subr.bf16.mxu0 0
    %1529 = vmatpush1.bf16.msra.mxu0 0
    %1530 = vmatprep.mubr.bf16.mxu0 0
    %1531 = vmatmul.mubr.bf16.gmra.mrb[0].mxu0 %v1496
    %v1532 = vpop.f32.mrb[0].mxu0
    %v1533 = vadd.f32 0.0, %v1532
    %v1534 = vpop.f32.mrb[0].mxu0
    %v1535 = vpop.f32.mrb[0].mxu0
    %v1536 = vadd.f32 0.0, %v1535
    %v1537 = vpop.f32.mrb[0].mxu0
    %1538 = vdwg.mxu0
    %v1539 = vadd.f32 %v1256, %v1533
    %v1540 = vadd.f32 %v1257, %v1536
    %v1541 = vld [vmem:[%s7] sm:$0x1]
    %v1543 = vlaneseq
    %v1544 = vshrl.u32 %v1543, 7
    %v1545 = vsub.s32 0, %v1544
    %v1546 = vrot.slane %v1541, %v1545
    %v1548 = vadd.f32 %v1539, %v1546
    %v1549 = vadd.f32 %v1540, %v1546
    %v1550 = vld [vmem:[%s8] sm:$0xf]
    %v1551 = vadd.f32 %v141, %v1548
    %v1552 = vadd.f32 %v142, %v1549
    %1553 = vadd.xlane.f32.xlu0 %v1551
    %v1554 = vpop.xlane.xlu0 %1553
    %1555 = vadd.xlane.f32.xlu0 %v1552
    %v1556 = vpop.xlane.xlu0 %1555
    %v1557 = vrcp.pop 128.0
    %v1558 = vmul.f32 %v1554, %v1557
    %v1559 = vmul.f32 %v1556, %v1557
    %v1560 = vsub.f32 %v1551, %v1558
    %v1561 = vsub.f32 %v1552, %v1559
    %v1562 = vmul.f32 %v1560, %v1560
    %v1563 = vmul.f32 %v1561, %v1561
    %1564 = vadd.xlane.f32.xlu0 %v1562
    %v1565 = vpop.xlane.xlu0 %1564
    %1566 = vadd.xlane.f32.xlu0 %v1563
    %v1567 = vpop.xlane.xlu0 %1566
    %v1568 = vmul.f32 %v1565, %v1557
    %v1569 = vmul.f32 %v1567, %v1557
    %v1570 = vadd.f32 %v1568, 1e-05
    %v1571 = vadd.f32 %v1569, 1e-05
    %v1572 = vrsqrt.pop %v1570
    %v1573 = vrsqrt.pop %v1571
    %v1574 = vmul.f32 %v1560, %v1572
    %v1575 = vmul.f32 %v1561, %v1573
    %v1576 = vlaneseq
    %v1577 = vshrl.u32 %v1576, 7
    %v1578 = vsub.s32 0, %v1577
    %v1579 = vrot.slane %v1550, %v1578
    %v1580 = vmul.f32 %v1574, %v1579
    %v1581 = vmul.f32 %v1575, %v1579
    %v1582 = vlaneseq
    %v1583 = vshrl.u32 %v1582, 7
    %v1584 = vsub.s32 1, %v1583
    %v1585 = vrot.slane %v1550, %v1584
    %v1586 = vadd.f32 %v1580, %v1585
    %v1587 = vadd.f32 %v1581, %v1585
    %v1588 = vpack.c.bf16 %v1587, %v1586
    %v1589 = vld [vmem:[#allocation11] sm:$0xff]
    %v1590 = vld [vmem:[#allocation11 + $0x8] sm:$0xff]
    %v1591 = vld [vmem:[#allocation11 + $0x10] sm:$0xff]
    %v1592 = vld [vmem:[#allocation11 + $0x18] sm:$0xff]
    %v1593 = vld [vmem:[#allocation11 + $0x20] sm:$0xff]
    %v1594 = vld [vmem:[#allocation11 + $0x28] sm:$0xff]
    %v1595 = vld [vmem:[#allocation11 + $0x30] sm:$0xff]
    %v1596 = vld [vmem:[#allocation11 + $0x38] sm:$0xff]
    %v1597 = vld [vmem:[#allocation11 + $0x40] sm:$0xff]
    %v1598 = vld [vmem:[#allocation11 + $0x48] sm:$0xff]
    %v1599 = vld [vmem:[#allocation11 + $0x50] sm:$0xff]
    %v1600 = vld [vmem:[#allocation11 + $0x58] sm:$0xff]
    %v1601 = vld [vmem:[#allocation11 + $0x60] sm:$0xff]
    %v1602 = vld [vmem:[#allocation11 + $0x68] sm:$0xff]
    %v1603 = vld [vmem:[#allocation11 + $0x70] sm:$0xff]
    %v1604 = vld [vmem:[#allocation11 + $0x78] sm:$0xff]
    %v1605 = vld [vmem:[%s10] sm:$0x3]
    %v1607 = vlaneseq
    %v1608 = vshrl.u32 %v1607, 7
    %v1609 = vsub.s32 0, %v1608
    %v1610 = vrot.slane %v1605, %v1609
    %v1611 = vlaneseq
    %v1612 = vshrl.u32 %v1611, 7
    %v1613 = vsub.s32 1, %v1612
    %v1614 = vrot.slane %v1605, %v1613
    %v1633 = vunpack.c.l.b16 %v1589
    %v1634 = vunpack.c.h.b16 %v1589
    %v1635 = vunpack.c.l.b16 %v1590
    %v1636 = vunpack.c.h.b16 %v1590
    %v1637 = vunpack.c.l.b16 %v1591
    %v1638 = vunpack.c.h.b16 %v1591
    %v1639 = vunpack.c.l.b16 %v1592
    %v1640 = vunpack.c.h.b16 %v1592
    %v1641 = vunpack.c.l.b16 %v1593
    %v1642 = vunpack.c.h.b16 %v1593
    %v1643 = vunpack.c.l.b16 %v1594
    %v1644 = vunpack.c.h.b16 %v1594
    %v1645 = vunpack.c.l.b16 %v1595
    %v1646 = vunpack.c.h.b16 %v1595
    %v1647 = vunpack.c.l.b16 %v1596
    %v1648 = vunpack.c.h.b16 %v1596
    %v1649 = vunpack.c.l.b16 %v1597
    %v1650 = vunpack.c.h.b16 %v1597
    %v1651 = vunpack.c.l.b16 %v1598
    %v1652 = vunpack.c.h.b16 %v1598
    %v1653 = vunpack.c.l.b16 %v1599
    %v1654 = vunpack.c.h.b16 %v1599
    %v1655 = vunpack.c.l.b16 %v1600
    %v1656 = vunpack.c.h.b16 %v1600
    %v1657 = vunpack.c.l.b16 %v1601
    %v1658 = vunpack.c.h.b16 %v1601
    %v1659 = vunpack.c.l.b16 %v1602
    %v1660 = vunpack.c.h.b16 %v1602
    %v1661 = vunpack.c.l.b16 %v1603
    %v1662 = vunpack.c.h.b16 %v1603
    %v1663 = vunpack.c.l.b16 %v1604
    %v1664 = vunpack.c.h.b16 %v1604
    %v1665 = vpack.c.b16 %v1635, %v1633
    %v1666 = vpack.c.b16 %v1636, %v1634
    %v1667 = vpack.c.b16 %v1639, %v1637
    %v1668 = vpack.c.b16 %v1640, %v1638
    %v1669 = vpack.c.b16 %v1643, %v1641
    %v1670 = vpack.c.b16 %v1644, %v1642
    %v1671 = vpack.c.b16 %v1647, %v1645
    %v1672 = vpack.c.b16 %v1648, %v1646
    %v1673 = vpack.c.b16 %v1651, %v1649
    %v1674 = vpack.c.b16 %v1652, %v1650
    %v1675 = vpack.c.b16 %v1655, %v1653
    %v1676 = vpack.c.b16 %v1656, %v1654
    %v1677 = vpack.c.b16 %v1659, %v1657
    %v1678 = vpack.c.b16 %v1660, %v1658
    %v1679 = vpack.c.b16 %v1663, %v1661
    %v1680 = vpack.c.b16 %v1664, %v1662
    %1697 = vmatprep.subr.bf16.mxu0 %v1666
    %1698 = vmatpush1.bf16.msra.mxu0 %v1665
    %1699 = vmatprep.subr.bf16.mxu0 %v1668
    %1700 = vmatpush1.bf16.msra.mxu0 %v1667
    %1701 = vmatprep.subr.bf16.mxu0 %v1670
    %1702 = vmatpush1.bf16.msra.mxu0 %v1669
    %1703 = vmatprep.subr.bf16.mxu0 %v1672
    %1704 = vmatpush1.bf16.msra.mxu0 %v1671
    %1705 = vmatprep.subr.bf16.mxu0 %v1674
    %1706 = vmatpush1.bf16.msra.mxu0 %v1673
    %1707 = vmatprep.subr.bf16.mxu0 %v1676
    %1708 = vmatpush1.bf16.msra.mxu0 %v1675
    %1709 = vmatprep.subr.bf16.mxu0 %v1678
    %1710 = vmatpush1.bf16.msra.mxu0 %v1677
    %1711 = vmatprep.subr.bf16.mxu0 %v1680
    %1712 = vmatpush1.bf16.msra.mxu0 %v1679
    %1713 = vmatprep.subr.bf16.mxu0 0
    %1714 = vmatpush1.bf16.msra.mxu0 0
    %1715 = vmatprep.subr.bf16.mxu0 0
    %1716 = vmatpush1.bf16.msra.mxu0 0
    %1717 = vmatprep.subr.bf16.mxu0 0
    %1718 = vmatpush1.bf16.msra.mxu0 0
    %1719 = vmatprep.subr.bf16.mxu0 0
    %1720 = vmatpush1.bf16.msra.mxu0 0
    %1721 = vmatprep.subr.bf16.mxu0 0
    %1722 = vmatpush1.bf16.msra.mxu0 0
    %1723 = vmatprep.subr.bf16.mxu0 0
    %1724 = vmatpush1.bf16.msra.mxu0 0
    %1725 = vmatprep.subr.bf16.mxu0 0
    %1726 = vmatpush1.bf16.msra.mxu0 0
    %1727 = vmatprep.subr.bf16.mxu0 0
    %1728 = vmatpush1.bf16.msra.mxu0 0
    %1729 = vmatprep.mubr.bf16.mxu0 0
    %1730 = vmatmul.mubr.bf16.gmra.mrb[0].mxu0 %v1588
    %v1731 = vpop.f32.mrb[0].mxu0
    %v1732 = vadd.f32 %v1610, %v1731
    %v1733 = vpop.f32.mrb[0].mxu0
    %v1734 = vadd.f32 %v1614, %v1733
    %v1735 = vpop.f32.mrb[0].mxu0
    %v1736 = vadd.f32 %v1610, %v1735
    %v1737 = vpop.f32.mrb[0].mxu0
    %v1738 = vadd.f32 %v1614, %v1737
    %1739 = vdwg.mxu0
    %v1740 = vmax.f32 %v1732, 0.0
    %v1741 = vmax.f32 %v1734, 0.0
    %v1742 = vmax.f32 %v1736, 0.0
    %v1743 = vmax.f32 %v1738, 0.0
    %v1744 = vpack.c.bf16 %v1742, %v1740
    %v1745 = vpack.c.bf16 %v1743, %v1741
    %v1746 = vld [vmem:[#allocation13] sm:$0xf]
    %v1747 = vld [vmem:[#allocation13 + $0x4] sm:$0xf]
    %v1748 = vld [vmem:[#allocation13 + $0x8] sm:$0xf]
    %v1749 = vld [vmem:[#allocation13 + $0xc] sm:$0xf]
    %v1750 = vld [vmem:[#allocation13 + $0x10] sm:$0xf]
    %v1751 = vld [vmem:[#allocation13 + $0x14] sm:$0xf]
    %v1752 = vld [vmem:[#allocation13 + $0x18] sm:$0xf]
    %v1753 = vld [vmem:[#allocation13 + $0x1c] sm:$0xf]
    %v1754 = vld [vmem:[#allocation13 + $0x20] sm:$0xf]
    %v1755 = vld [vmem:[#allocation13 + $0x24] sm:$0xf]
    %v1756 = vld [vmem:[#allocation13 + $0x28] sm:$0xf]
    %v1757 = vld [vmem:[#allocation13 + $0x2c] sm:$0xf]
    %v1758 = vld [vmem:[#allocation13 + $0x30] sm:$0xf]
    %v1759 = vld [vmem:[#allocation13 + $0x34] sm:$0xf]
    %v1760 = vld [vmem:[#allocation13 + $0x38] sm:$0xf]
    %v1761 = vld [vmem:[#allocation13 + $0x3c] sm:$0xf]
    %v1762 = vld [vmem:[#allocation13 + $0x40] sm:$0xf]
    %v1763 = vld [vmem:[#allocation13 + $0x44] sm:$0xf]
    %v1764 = vld [vmem:[#allocation13 + $0x48] sm:$0xf]
    %v1765 = vld [vmem:[#allocation13 + $0x4c] sm:$0xf]
    %v1766 = vld [vmem:[#allocation13 + $0x50] sm:$0xf]
    %v1767 = vld [vmem:[#allocation13 + $0x54] sm:$0xf]
    %v1768 = vld [vmem:[#allocation13 + $0x58] sm:$0xf]
    %v1769 = vld [vmem:[#allocation13 + $0x5c] sm:$0xf]
    %v1770 = vld [vmem:[#allocation13 + $0x60] sm:$0xf]
    %v1771 = vld [vmem:[#allocation13 + $0x64] sm:$0xf]
    %v1772 = vld [vmem:[#allocation13 + $0x68] sm:$0xf]
    %v1773 = vld [vmem:[#allocation13 + $0x6c] sm:$0xf]
    %v1774 = vld [vmem:[#allocation13 + $0x70] sm:$0xf]
    %v1775 = vld [vmem:[#allocation13 + $0x74] sm:$0xf]
    %v1776 = vld [vmem:[#allocation13 + $0x78] sm:$0xf]
    %v1777 = vld [vmem:[#allocation13 + $0x7c] sm:$0xf]
    %v1778 = vld [vmem:[%s12] sm:$0x1]
    %v1780 = vlaneseq
    %v1781 = vshrl.u32 %v1780, 7
    %v1782 = vsub.s32 0, %v1781
    %v1783 = vrot.slane %v1778, %v1782
    %v1817 = vunpack.c.l.b16 %v1746
    %v1818 = vunpack.c.l.b16 %v1747
    %v1819 = vunpack.c.l.b16 %v1748
    %v1820 = vunpack.c.l.b16 %v1749
    %v1821 = vunpack.c.l.b16 %v1750
    %v1822 = vunpack.c.l.b16 %v1751
    %v1823 = vunpack.c.l.b16 %v1752
    %v1824 = vunpack.c.l.b16 %v1753
    %v1825 = vunpack.c.l.b16 %v1754
    %v1826 = vunpack.c.l.b16 %v1755
    %v1827 = vunpack.c.l.b16 %v1756
    %v1828 = vunpack.c.l.b16 %v1757
    %v1829 = vunpack.c.l.b16 %v1758
    %v1830 = vunpack.c.l.b16 %v1759
    %v1831 = vunpack.c.l.b16 %v1760
    %v1832 = vunpack.c.l.b16 %v1761
    %v1833 = vunpack.c.l.b16 %v1762
    %v1834 = vunpack.c.l.b16 %v1763
    %v1835 = vunpack.c.l.b16 %v1764
    %v1836 = vunpack.c.l.b16 %v1765
    %v1837 = vunpack.c.l.b16 %v1766
    %v1838 = vunpack.c.l.b16 %v1767
    %v1839 = vunpack.c.l.b16 %v1768
    %v1840 = vunpack.c.l.b16 %v1769
    %v1841 = vunpack.c.l.b16 %v1770
    %v1842 = vunpack.c.l.b16 %v1771
    %v1843 = vunpack.c.l.b16 %v1772
    %v1844 = vunpack.c.l.b16 %v1773
    %v1845 = vunpack.c.l.b16 %v1774
    %v1846 = vunpack.c.l.b16 %v1775
    %v1847 = vunpack.c.l.b16 %v1776
    %v1848 = vunpack.c.l.b16 %v1777
    %v1849 = vpack.c.b16 %v1818, %v1817
    %v1850 = vpack.c.b16 %v1820, %v1819
    %v1851 = vpack.c.b16 %v1822, %v1821
    %v1852 = vpack.c.b16 %v1824, %v1823
    %v1853 = vpack.c.b16 %v1826, %v1825
    %v1854 = vpack.c.b16 %v1828, %v1827
    %v1855 = vpack.c.b16 %v1830, %v1829
    %v1856 = vpack.c.b16 %v1832, %v1831
    %v1857 = vpack.c.b16 %v1834, %v1833
    %v1858 = vpack.c.b16 %v1836, %v1835
    %v1859 = vpack.c.b16 %v1838, %v1837
    %v1860 = vpack.c.b16 %v1840, %v1839
    %v1861 = vpack.c.b16 %v1842, %v1841
    %v1862 = vpack.c.b16 %v1844, %v1843
    %v1863 = vpack.c.b16 %v1846, %v1845
    %v1864 = vpack.c.b16 %v1848, %v1847
    %1881 = vmatprep.subr.bf16.mxu0 0
    %1882 = vmatpush1.bf16.msra.mxu0 %v1849
    %1883 = vmatprep.subr.bf16.mxu0 0
    %1884 = vmatpush1.bf16.msra.mxu0 %v1850
    %1885 = vmatprep.subr.bf16.mxu0 0
    %1886 = vmatpush1.bf16.msra.mxu0 %v1851
    %1887 = vmatprep.subr.bf16.mxu0 0
    %1888 = vmatpush1.bf16.msra.mxu0 %v1852
    %1889 = vmatprep.subr.bf16.mxu0 0
    %1890 = vmatpush1.bf16.msra.mxu0 %v1853
    %1891 = vmatprep.subr.bf16.mxu0 0
    %1892 = vmatpush1.bf16.msra.mxu0 %v1854
    %1893 = vmatprep.subr.bf16.mxu0 0
    %1894 = vmatpush1.bf16.msra.mxu0 %v1855
    %1895 = vmatprep.subr.bf16.mxu0 0
    %1896 = vmatpush1.bf16.msra.mxu0 %v1856
    %1897 = vmatprep.subr.bf16.mxu0 0
    %1898 = vmatpush1.bf16.msra.mxu0 %v1857
    %1899 = vmatprep.subr.bf16.mxu0 0
    %1900 = vmatpush1.bf16.msra.mxu0 %v1858
    %1901 = vmatprep.subr.bf16.mxu0 0
    %1902 = vmatpush1.bf16.msra.mxu0 %v1859
    %1903 = vmatprep.subr.bf16.mxu0 0
    %1904 = vmatpush1.bf16.msra.mxu0 %v1860
    %1905 = vmatprep.subr.bf16.mxu0 0
    %1906 = vmatpush1.bf16.msra.mxu0 %v1861
    %1907 = vmatprep.subr.bf16.mxu0 0
    %1908 = vmatpush1.bf16.msra.mxu0 %v1862
    %1909 = vmatprep.subr.bf16.mxu0 0
    %1910 = vmatpush1.bf16.msra.mxu0 %v1863
    %1911 = vmatprep.subr.bf16.mxu0 0
    %1912 = vmatpush1.bf16.msra.mxu0 %v1864
    %1913 = vmatprep.mubr.bf16.mxu0 %v1745
    %1914 = vmatmul.mubr.bf16.gmra.mrb[0].mxu0 %v1744
    %v1915 = vpop.f32.mrb[0].mxu0
    %v1916 = vadd.f32 %v1783, %v1915
    %v1917 = vpop.f32.mrb[0].mxu0
    %v1918 = vpop.f32.mrb[0].mxu0
    %v1919 = vadd.f32 %v1783, %v1918
    %v1920 = vpop.f32.mrb[0].mxu0
    %1921 = vdwg.mxu0
    %v1922 = vadd.f32 %v1586, %v1916
    %v1923 = vadd.f32 %v1587, %v1919
    %1924 = vadd.xlane.f32.xlu0 %v1922
    %v1925 = vpop.xlane.xlu0 %1924
    %1926 = vadd.xlane.f32.xlu0 %v1923
    %v1927 = vpop.xlane.xlu0 %1926
    %v1928 = vmul.f32 %v1925, %v1557
    %v1929 = vmul.f32 %v1927, %v1557
    %v1930 = vsub.f32 %v1922, %v1928
    %v1931 = vsub.f32 %v1923, %v1929
    %v1932 = vmul.f32 %v1930, %v1930
    %v1933 = vmul.f32 %v1931, %v1931
    %1934 = vadd.xlane.f32.xlu0 %v1932
    %v1935 = vpop.xlane.xlu0 %1934
    %1936 = vadd.xlane.f32.xlu0 %v1933
    %v1937 = vpop.xlane.xlu0 %1936
    %v1938 = vmul.f32 %v1935, %v1557
    %v1939 = vmul.f32 %v1937, %v1557
    %v1940 = vadd.f32 %v1938, 1e-05
    %v1941 = vadd.f32 %v1939, 1e-05
    %v1942 = vrsqrt.pop %v1940
    %v1943 = vrsqrt.pop %v1941
    %v1944 = vmul.f32 %v1930, %v1942
    %v1945 = vmul.f32 %v1931, %v1943
    %v1946 = vlaneseq
    %v1947 = vshrl.u32 %v1946, 7
    %v1948 = vsub.s32 2, %v1947
    %v1949 = vrot.slane %v1550, %v1948
    %v1950 = vmul.f32 %v1944, %v1949
    %v1951 = vmul.f32 %v1945, %v1949
    %v1952 = vlaneseq
    %v1953 = vshrl.u32 %v1952, 7
    %v1954 = vsub.s32 3, %v1953
    %v1955 = vrot.slane %v1550, %v1954
    %v1956 = vadd.f32 %v1950, %v1955
    %v1957 = vadd.f32 %v1951, %v1955
    %1958 = vst [vmem:[#allocation14] sm:$0xff] %v1956
    %1959 = vst [vmem:[#allocation14 + $0x8] sm:$0xff] %v1957
    // Predicated region
    $region82: #{tpu_custom_call.1} parent=1 // pred_check
      _
    $region83: #{tpu_custom_call.1} parent=1 // pred_check_branch
      %1961 = sbr.rel (0) target = $region85
    $region84: #{tpu_custom_call.1} parent=1 // pred_region
      %s1963 = ssub.s32 256, 256
      %1964 = vsyncadd [#allocation4], %s1963
      %s1965 = sshll.u32 [#allocation14], 4
      %s1966 = int_to_ptr.vmem [resolvable:$true] %s1965
      %1971 = dma.vmem_to_hbm [thread:$0]  %s1966, 256, %s13, [#allocation4], 128, 128, 8
    $region85: #{tpu_custom_call.1} parent=1 // pred_fallthru
      _
    // Predicated region
    $region86: #{tpu_custom_call.1} parent=1 // pred_check
      _
    $region87: #{tpu_custom_call.1} parent=1 // pred_check_branch
      %1973 = sbr.rel (0) target = $region89
    $region88: #{tpu_custom_call.1} parent=1 // pred_region
      %1974 = dma.done [#allocation4], 256
    $region89: #{tpu_custom_call.1} parent=1 // pred_fallthru
      _
    %1975 = vsyncpa [#allocation3], 1
    %1976 = vsyncpa [#allocation6], 1
    %1977 = vsyncpa [#allocation9], 1
    %1978 = vsyncpa [#allocation12], 1
    %1979 = vsyncpa [#allocation4], 1

</llo_original>
